<compile_context>
chip_gen: v5e
topology: v5e:2x2
jax: 0.10.0
libtpu: 0.0.40
codegen_flags: <defaults>
</compile_context>

<pallas_src>
import functools

import jax
import jax.numpy as jnp
from jax import lax
from jax.experimental import pallas as pl
from jax.experimental.pallas import tpu as pltpu

N_EMBD = 384           # module's global n_embd
BLOCK_SIZE = 256       # causal mask limit (T <= BLOCK_SIZE)
COMPUTE_DTYPE = jnp.bfloat16   # MXU operand dtype; accumulation & softmax stay f32
LANE = 128


def _round_up(x, m):
    return (x + m - 1) // m * m


def _head_kernel(x_ref, w_ref, o_ref, *, head_size, slab):
    # x_ref: (Bb, T, C) block of several batch elements.
    # w_ref: fused (C, 2*S + H) weights, bf16, layout [Wq*scale | 0pad | Wk | 0pad | Wv]
    #        with S = round_up(H, 128) so every slice below starts on a 128-lane boundary.
    # o_ref: (1, Bb, T*H) lane-dense output block.
    Bb, T, C = x_ref.shape
    H = head_size
    S = slab

    x = x_ref[...].reshape(Bb * T, C)
    if x.dtype != COMPUTE_DTYPE:
        x = x.astype(COMPUTE_DTYPE)

    # Fused QKV projection: one (Bb*T, C) @ (C, 2S+H) MXU matmul, bf16 in / f32 accumulate.
    qkv = jnp.dot(x, w_ref[...], preferred_element_type=jnp.float32)
    qkv = qkv.reshape(Bb, T, 2 * S + H)

    # Lane-aligned slices (q/k zero-padded to S columns; pad columns are exact zeros).
    q = qkv[..., 0 * S:1 * S].astype(COMPUTE_DTYPE)       # scale already folded into Wq
    k = qkv[..., 1 * S:2 * S].astype(COMPUTE_DTYPE)
    v = qkv[..., 2 * S:2 * S + H].astype(COMPUTE_DTYPE)

    # Attention scores: contract last dims of q and k (no materialized transpose).
    # Padded columns of q/k contribute 0 to the contraction.
    wei = jnp.einsum("bqd,bkd->bqk", q, k,
                     preferred_element_type=jnp.float32)   # (Bb, T, T) f32

    # (T, T) additive causal mask, broadcast over the batch axis.
    row = lax.broadcasted_iota(jnp.int32, (T, T), 0)
    col = lax.broadcasted_iota(jnp.int32, (T, T), 1)
    mask = jnp.where(col <= row, 0.0, -jnp.inf).astype(jnp.float32)
    wei = wei + mask[None, :, :]

    # Numerically-stable softmax in f32 (VPU + EUP).
    m = jnp.max(wei, axis=-1, keepdims=True)
    e = jnp.exp(wei - m)
    denom = jnp.sum(e, axis=-1, keepdims=True)
    p = e * pl.reciprocal(denom, approx=True)

    # Weighted sum of values (bf16 operands, f32 accumulate).
    out = jnp.einsum("bqk,bkd->bqd", p.astype(COMPUTE_DTYPE), v,
                     preferred_element_type=jnp.float32)   # (Bb, T, H)

    # Lane-dense store: collapse (T, H) into T*H lanes so the store is an unmasked vst.
    o_ref[...] = out.reshape(1, Bb, T * H).astype(o_ref.dtype)


def _pick_batch_block(B, T, C, H, S, x_itemsize, out_itemsize,
                      budget_bytes=16 * 1024 * 1024):
    """Largest divisor of B whose per-step VMEM estimate fits `budget_bytes`,
    while keeping >= 2 grid steps when B >= 2 (v7x megacore occupancy)."""
    n = 2 * S + H   # fused weight / qkv width

    def step_bytes(bb):
        tot = 2 * bb * T * C * x_itemsize        # x block (double-buffered)
        tot += 2 * C * n * 2                     # bf16 fused weights (double-buffered)
        tot += 2 * bb * T * H * out_itemsize     # output block (double-buffered)
        tot += bb * T * n * 4                    # qkv (f32)
        tot += bb * T * n * 2                    # q, k, v (bf16)
        tot += 2 * bb * T * T * 4                # scores + exp (f32)
        tot += bb * T * T * 2                    # probabilities (bf16)
        tot += bb * T * H * 4                    # PV accumulator (f32)
        tot += T * T * 4                         # causal mask
        return tot

    cap = B if B < 2 else max(1, B // 2)         # keep >= 2 steps when possible
    cap = min(cap, 32)
    best = 1
    for bb in range(1, cap + 1):
        if B % bb == 0 and step_bytes(bb) <= budget_bytes:
            best = bb
    return best


def head_forward(x, wq_t, wk_t, wv_t, *, out_dtype=None):
    """Single-head causal self-attention (eval mode).

    x:              (B, T, C)  float32 or bfloat16
    wq_t/wk_t/wv_t: (C, H)     pre-transposed nn.Linear weights (no bias)
    returns         (B, T, H)  in out_dtype (defaults to x.dtype)
    """
    B, T, C = x.shape
    H = wq_t.shape[1]
    assert C == wq_t.shape[0] == wk_t.shape[0] == wv_t.shape[0]
    assert T <= BLOCK_SIZE
    out_dtype = x.dtype if out_dtype is None else out_dtype

    S = _round_up(H, LANE)

    # Fold the C**-0.5 score scale into Wq (free).  Zero-pad Q/K slabs to a 128-lane
    # multiple so in-kernel slices are lane-aligned; cast fused weights to bf16 once.
    scale = float(C) ** (-0.5)
    wq_s = wq_t * scale
    if S != H:
        zpad = jnp.zeros((C, S - H), wq_t.dtype)
        w_qkv = jnp.concatenate([wq_s, zpad, wk_t, zpad, wv_t], axis=1)
    else:
        w_qkv = jnp.concatenate([wq_s, wk_t, wv_t], axis=1)
    w_qkv = w_qkv.astype(COMPUTE_DTYPE)
    W = w_qkv.shape[1]

    out_itemsize = jnp.dtype(out_dtype).itemsize
    Bb = _pick_batch_block(B, T, C, H, S, x.dtype.itemsize, out_itemsize)
    n_steps = B // Bb

    kernel = functools.partial(_head_kernel, head_size=H, slab=S)

    # Advisory cost estimate for XLA's scheduler around the custom call.
    flops = 2 * B * T * C * W + 2 * B * T * T * S + 2 * B * T * T * H
    cost = pl.CostEstimate(
        flops=flops,
        transcendentals=B * T * T,
        bytes_accessed=(x.size * x.dtype.itemsize
                        + w_qkv.size * w_qkv.dtype.itemsize
                        + B * T * H * out_itemsize),
    )

    out = pl.pallas_call(
        kernel,
        out_shape=jax.ShapeDtypeStruct((n_steps, Bb, T * H), out_dtype),
        grid_spec=pltpu.PrefetchScalarGridSpec(
            num_scalar_prefetch=0,
            grid=(n_steps,),
            in_specs=[
                pl.BlockSpec((Bb, T, C), lambda b: (b, 0, 0)),   # Bb batches per step
                pl.BlockSpec((C, W), lambda b: (0, 0)),          # fused [Wq*s|0|Wk|0|Wv]
            ],
            out_specs=pl.BlockSpec((1, Bb, T * H), lambda b: (b, 0, 0)),
        ),
        compiler_params=pltpu.CompilerParams(
            dimension_semantics=("parallel",),
            vmem_limit_bytes=32 * 1024 * 1024,
        ),
        cost_estimate=cost,
    )(x, w_qkv)

    return out.reshape(B, T, H)


def head_forward_ref(x, wq_t, wk_t, wv_t):
    """Pure-JAX f32 reference matching the PyTorch forward (eval mode)."""
    B, T, C = x.shape
    q = x @ wq_t
    k = x @ wk_t
    v = x @ wv_t
    wei = jnp.einsum("btd,bsd->bts", q, k) * (C ** (-0.5))
    mask = jnp.tril(jnp.ones((T, T), dtype=bool))
    wei = jnp.where(mask[None], wei, -jnp.inf)
    wei = jax.nn.softmax(wei, axis=-1)
    return jnp.einsum("bts,bsd->btd", wei, v)


if __name__ == "__main__":
    B, T, C = 4, 64, N_EMBD
    head_size = 64

    key = jax.random.PRNGKey(0)
    kx, kq, kk, kv = jax.random.split(key, 4)

    x = jax.random.normal(kx, (B, T, C), dtype=jnp.float32)
    # nn.Linear(n_embd, head_size) weight is (head_size, n_embd); store transposed (C, H).
    init_scale = 1.0 / (C ** 0.5)
    wq_t = jax.random.uniform(kq, (C, head_size), jnp.float32, -init_scale, init_scale)
    wk_t = jax.random.uniform(kk, (C, head_size), jnp.float32, -init_scale, init_scale)
    wv_t = jax.random.uniform(kv, (C, head_size), jnp.float32, -init_scale, init_scale)

    out = head_forward(x, wq_t, wk_t, wv_t)
    out = jax.block_until_ready(out)

    ref = head_forward_ref(x, wq_t, wk_t, wv_t)
    assert out.shape == (B, T, head_size)
    # bf16 MXU operands (f32 accumulation) -> slightly loosened tolerance vs f32 reference.
    assert jnp.allclose(out, ref, atol=2e-2, rtol=2e-2), "mismatch vs reference"

    print("KERNEL_OK")
</pallas_src>

<mosaic_0001>
module attributes {stable_mosaic.version = 11 : i64} {
  func.func @_head_kernel(%arg0: i32, %arg1: memref<2x64x384xf32, #tpu.memory_space<vmem>>, %arg2: memref<384x320xbf16, #tpu.memory_space<vmem>>, %arg3: memref<1x2x4096xf32, #tpu.memory_space<vmem>>) attributes {dimension_semantics = [#tpu.dimension_semantics<parallel>], iteration_bounds = array<i64: 2>, scalar_prefetch = 0 : i64, scratch_operands = 0 : i64, tpu.core_type = #tpu.core_type<tc>, window_params = [{transform_indices = @transform_0, window_bounds = array<i64: 2, 64, 384>}, {pipeline_mode = #tpu.pipeline_mode<synchronous>, transform_indices = @transform_1, window_bounds = array<i64: 384, 320>}, {transform_indices = @transform_2, window_bounds = array<i64: 1, 2, 4096>}]} {
    %c0 = arith.constant 0 : index
    %c0_0 = arith.constant 0 : index
    %c0_1 = arith.constant 0 : index
    %0 = vector.load %arg1[%c0, %c0_0, %c0_1] : memref<2x64x384xf32, #tpu.memory_space<vmem>>, vector<2x64x384xf32>
    %1 = vector.shape_cast %0 : vector<2x64x384xf32> to vector<128x384xf32>
    %2 = arith.truncf %1 : vector<128x384xf32> to vector<128x384xbf16>
    %c0_2 = arith.constant 0 : index
    %c0_3 = arith.constant 0 : index
    %3 = vector.load %arg2[%c0_2, %c0_3] : memref<384x320xbf16, #tpu.memory_space<vmem>>, vector<384x320xbf16>
    %cst = arith.constant dense<0.000000e+00> : vector<128x320xf32>
    %4 = tpu.matmul %2, %3, %cst {dimension_numbers = #tpu.dot_dimension_numbers<[1], [0], [0], [1], [0, 0, 1, 1], [], []>} : vector<128x384xbf16>, vector<384x320xbf16>, vector<128x320xf32> -> vector<128x320xf32>
    %5 = vector.shape_cast %4 : vector<128x320xf32> to vector<2x64x320xf32>
    %6 = vector.extract_strided_slice %5 {offsets = [0, 0, 0], sizes = [2, 64, 128], strides = [1, 1, 1]} : vector<2x64x320xf32> to vector<2x64x128xf32>
    %7 = arith.truncf %6 : vector<2x64x128xf32> to vector<2x64x128xbf16>
    %8 = vector.extract_strided_slice %5 {offsets = [0, 0, 128], sizes = [2, 64, 128], strides = [1, 1, 1]} : vector<2x64x320xf32> to vector<2x64x128xf32>
    %9 = arith.truncf %8 : vector<2x64x128xf32> to vector<2x64x128xbf16>
    %10 = vector.extract_strided_slice %5 {offsets = [0, 0, 256], sizes = [2, 64, 64], strides = [1, 1, 1]} : vector<2x64x320xf32> to vector<2x64x64xf32>
    %11 = arith.truncf %10 : vector<2x64x64xf32> to vector<2x64x64xbf16>
    "tpu.trace_start"() <{level = 10 : i32, message = "bqd,bkd->bqk"}> : () -> ()
    %cst_4 = arith.constant dense<0.000000e+00> : vector<2x64x64xf32>
    %12 = tpu.matmul %7, %9, %cst_4 {dimension_numbers = #tpu.dot_dimension_numbers<[2], [2], [1], [1], [0, 0, 0, 1, 1, 1], [0], [0]>} : vector<2x64x128xbf16>, vector<2x64x128xbf16>, vector<2x64x64xf32> -> vector<2x64x64xf32>
    "tpu.trace_stop"() : () -> ()
    %13 = tpu.iota {dimensions = array<i32: 0>} : vector<64x64xi32>
    %14 = tpu.iota {dimensions = array<i32: 1>} : vector<64x64xi32>
    %15 = arith.cmpi sle, %14, %13 : vector<64x64xi32>
    %cst_5 = arith.constant 0.000000e+00 : f32
    %cst_6 = arith.constant 0xFF800000 : f32
    %16 = vector.broadcast %cst_5 : f32 to vector<64x64xf32>
    %17 = vector.broadcast %cst_6 : f32 to vector<64x64xf32>
    %18 = arith.select %15, %16, %17 : vector<64x64xi1>, vector<64x64xf32>
    %19 = vector.shape_cast %18 : vector<64x64xf32> to vector<1x64x64xf32>
    %20 = vector.broadcast %19 : vector<1x64x64xf32> to vector<2x64x64xf32>
    %21 = arith.addf %12, %20 : vector<2x64x64xf32>
    %cst_7 = arith.constant dense<0xFF800000> : vector<2x64xf32>
    %22 = vector.multi_reduction <maximumf>, %21, %cst_7 [2] : vector<2x64x64xf32> to vector<2x64xf32>
    %23 = vector.shape_cast %22 : vector<2x64xf32> to vector<2x64x1xf32>
    %24 = vector.broadcast %23 : vector<2x64x1xf32> to vector<2x64x64xf32>
    %25 = arith.subf %21, %24 : vector<2x64x64xf32>
    %26 = math.exp %25 : vector<2x64x64xf32>
    %cst_8 = arith.constant dense<0.000000e+00> : vector<2x64xf32>
    %27 = vector.multi_reduction <add>, %26, %cst_8 [2] : vector<2x64x64xf32> to vector<2x64xf32>
    %28 = vector.shape_cast %27 : vector<2x64xf32> to vector<2x64x1xf32>
    %29 = tpu.reciprocal %28 {approx = true} : vector<2x64x1xf32> -> vector<2x64x1xf32>
    %30 = vector.broadcast %29 : vector<2x64x1xf32> to vector<2x64x64xf32>
    %31 = arith.mulf %26, %30 : vector<2x64x64xf32>
    %32 = arith.truncf %31 : vector<2x64x64xf32> to vector<2x64x64xbf16>
    "tpu.trace_start"() <{level = 10 : i32, message = "bqk,bkd->bqd"}> : () -> ()
    %cst_9 = arith.constant dense<0.000000e+00> : vector<2x64x64xf32>
    %33 = tpu.matmul %32, %11, %cst_9 {dimension_numbers = #tpu.dot_dimension_numbers<[2], [1], [1], [2], [0, 0, 0, 1, 1, 2], [0], [0]>} : vector<2x64x64xbf16>, vector<2x64x64xbf16>, vector<2x64x64xf32> -> vector<2x64x64xf32>
    "tpu.trace_stop"() : () -> ()
    %34 = vector.shape_cast %33 : vector<2x64x64xf32> to vector<1x2x4096xf32>
    %c0_10 = arith.constant 0 : index
    %c0_11 = arith.constant 0 : index
    %c0_12 = arith.constant 0 : index
    %35 = vector.load %arg3[%c0_10, %c0_11, %c0_12] : memref<1x2x4096xf32, #tpu.memory_space<vmem>>, vector<1x2x4096xf32>
    tpu.vector_store %arg3[%c0_10, %c0_11, %c0_12], %34 {strides = array<i32>} : memref<1x2x4096xf32, #tpu.memory_space<vmem>>, vector<1x2x4096xf32>,
    return
  }
  func.func @transform_0(%arg0: i32) -> (i32, i32, i32) {
    %c0_i32 = arith.constant 0 : i32
    %c0_i32_0 = arith.constant 0 : i32
    %c0_i32_1 = arith.constant 0 : i32
    return %arg0, %c0_i32, %c0_i32_0 : i32, i32, i32
  }
  func.func @transform_1(%arg0: i32) -> (i32, i32) {
    %c0_i32 = arith.constant 0 : i32
    %c0_i32_0 = arith.constant 0 : i32
    %c0_i32_1 = arith.constant 0 : i32
    return %c0_i32, %c0_i32_0 : i32, i32
  }
  func.func @transform_2(%arg0: i32) -> (i32, i32, i32) {
    %c0_i32 = arith.constant 0 : i32
    %c0_i32_0 = arith.constant 0 : i32
    %c0_i32_1 = arith.constant 0 : i32
    return %arg0, %c0_i32, %c0_i32_0 : i32, i32, i32
  }
}

</mosaic_0001>

<llo_original>
// kernel: tpu_custom_call.1
$region0: #{tpu_custom_call.1}
  #allocation0 [shape = 'u32[]', space=smem, size = 0x4, offset = 0x4, fixed_abs, tag = 'smem constant byte address 0x4 - core index']
  #allocation1 [shape = 'u32[72,128]{1,0:T(1,128)}', space=vmem, size = 0x9000, scoped, tag = 'internal scratch']
  %s0 = inlined_call_operand.vmem [shape: f32[4,64,384], index: 0, kind: input, shape index: {}]
  %s1 = inlined_call_operand.vmem [shape: bf16[384,320], index: 1, kind: input, shape index: {}]
  %s2 = inlined_call_operand.hbm [shape: f32[2,2,4096], index: 2, kind: output, shape index: {}]
  %s3 = sld [smem:[#allocation0]]
  $region41: #{tpu_custom_call.1} parent=0
    _
  %s5 = ssub.s32 1, %s3
  %s6 = scalar_select 0, %s5, %s3
  $region1: #{tpu_custom_call.1} parent=0
    #allocation2 [shape = 'u8[65536]{0}', space=vmem, size = 0x10000, scoped, tag = 'output window, operand 0']
    #allocation3 [shape = 's32[2]{0}', space=sflag, size = 0x8, scoped, tag = 'scoped memory for tpu_custom_call.1']
    %7 = vsyncpa [#allocation3], 0
    %s8 = scalar_lea.sflag [#allocation3], 1
    %9 = vsyncpa %s8, 0
    loop: start=0, step=1, limit=4
    $region2: #{tpu_custom_call.1} parent=1 // loop_pre_header
      _
    $region3: #{tpu_custom_call.1} parent=1 // loop_header
      %s11 = sphi 0, %s15
      %p12 = scmp.ge.s32.totalorder %s11, 4
      %s21 = sphi 0, %s23
      %s24 = sphi 0, %s21
      %s25 = sphi 0, %s24
      %s41 = sphi 0, %s25
      %s45 = sphi 0, %s45
      %s47 = sphi 0, %s45
      %s48 = sphi 0, %s47
      %s62 = sphi 0, %s48
      %s68 = sphi 0, %s70
      %s71 = sphi 0, %s68
      %s72 = sphi 0, %s71
      %s88 = sphi 0, %s72
    $region4: #{tpu_custom_call.1} parent=1 // loop_header_branch
      %14 = sbr.rel (%p12) target = $region8
    $region5: #{tpu_custom_call.1} parent=1 // loop_body
      %s16 = ssub.s32 %s11, 1
      %s17 = ssub.s32 %s11, 2
      %s18 = sadd.s32 %s11, 1
      %s19 = ssub.s32 %s11, %s18
      %p20 = scmp.eq.s32.totalorder %s19, 0
      %s22 = sadd.s32 %s21, 1
      %s23 = scalar_select %p20, %s21, %s22
      %p26 = pneg %p20
      %p27 = scmp.eq.s32.totalorder %s11, 1
      %p28 = por %p26, %p27
      %p29 = scmp.ne.s32.totalorder %s21, %s24
      %p30 = scmp.eq.s32.totalorder %s11, 0
      %p31 = por %p29, %p30
      %p32 = scmp.ne.s32.totalorder %s21, %s24
      %p33 = scmp.eq.s32.totalorder %s16, 1
      %p34 = por %p32, %p33
      %p35 = scmp.ne.s32.totalorder %s24, %s25
      %p36 = scmp.eq.s32.totalorder %s16, 0
      %p37 = por %p35, %p36
      %p38 = scmp.ne.s32.totalorder %s24, %s25
      %p39 = scmp.eq.s32.totalorder %s17, 1
      %p40 = por %p38, %p39
      %p42 = scmp.ne.s32.totalorder %s25, %s41
      %p43 = scmp.eq.s32.totalorder %s17, 0
      %p44 = por %p42, %p43
      %s46 = sadd.s32 %s45, 1
      %p49 = scmp.eq.s32.totalorder %s11, 1
      %p50 = scmp.ne.s32.totalorder %s45, %s47
      %p51 = scmp.eq.s32.totalorder %s11, 0
      %p52 = por %p50, %p51
      %p53 = scmp.ne.s32.totalorder %s45, %s47
      %p54 = scmp.eq.s32.totalorder %s16, 1
      %p55 = por %p53, %p54
      %p56 = scmp.ne.s32.totalorder %s47, %s48
      %p57 = scmp.eq.s32.totalorder %s16, 0
      %p58 = por %p56, %p57
      %p59 = scmp.ne.s32.totalorder %s47, %s48
      %p60 = scmp.eq.s32.totalorder %s17, 1
      %p61 = por %p59, %p60
      %p63 = scmp.ne.s32.totalorder %s48, %s62
      %p64 = scmp.eq.s32.totalorder %s17, 0
      %p65 = por %p63, %p64
      %s66 = ssub.s32 %s11, %s18
      %p67 = scmp.eq.s32.totalorder %s66, 0
      %s69 = sadd.s32 %s68, 1
      %s70 = scalar_select %p67, %s68, %s69
      %p73 = pneg %p67
      %p74 = scmp.eq.s32.totalorder %s11, 1
      %p75 = por %p73, %p74
      %p76 = scmp.ne.s32.totalorder %s68, %s71
      %p77 = scmp.eq.s32.totalorder %s11, 0
      %p78 = por %p76, %p77
      %p79 = scmp.ne.s32.totalorder %s68, %s71
      %p80 = scmp.eq.s32.totalorder %s16, 1
      %p81 = por %p79, %p80
      %p82 = scmp.ne.s32.totalorder %s71, %s72
      %p83 = scmp.eq.s32.totalorder %s16, 0
      %p84 = por %p82, %p83
      %p85 = scmp.ne.s32.totalorder %s71, %s72
      %p86 = scmp.eq.s32.totalorder %s17, 1
      %p87 = por %p85, %p86
      %p89 = scmp.ne.s32.totalorder %s72, %s88
      %p90 = scmp.eq.s32.totalorder %s17, 0
      %p91 = por %p89, %p90
      %p92 = scmp.le.s32.totalorder 1, %s11
      %p93 = scmp.lt.s32.totalorder %s11, 3
      %p94 = pnand %p92, %p93
      %p95 = pneg %p94
      // Predicated region
      $region9: #{tpu_custom_call.1} parent=5 // pred_check
        _
      $region10: #{tpu_custom_call.1} parent=5 // pred_check_branch
        %97 = sbr.rel (%p94) target = $region12
      $region11: #{tpu_custom_call.1} parent=5 // pred_region
        %s98 = ssub.s32 %s11, 1
        // Predicated region
        $region13: #{tpu_custom_call.1} parent=11 // pred_check
          %p99 = pneg %p58
        $region14: #{tpu_custom_call.1} parent=11 // pred_check_branch
          %101 = sbr.rel (%p99) target = $region16
        $region15: #{tpu_custom_call.1} parent=11 // pred_region
          _
        $region16: #{tpu_custom_call.1} parent=11 // pred_fallthru
          _
      $region12: #{tpu_custom_call.1} parent=5 // pred_fallthru
        _
      %p102 = scmp.lt.s32.totalorder %s11, 2
      // Predicated region
      $region17: #{tpu_custom_call.1} parent=5 // pred_check
        %p103 = pneg %p102
      $region18: #{tpu_custom_call.1} parent=5 // pred_check_branch
        %105 = sbr.rel (%p103) target = $region20
      $region19: #{tpu_custom_call.1} parent=5 // pred_region
        // Predicated region
        $region21: #{tpu_custom_call.1} parent=19 // pred_check
          %p106 = pneg %p31
        $region22: #{tpu_custom_call.1} parent=19 // pred_check_branch
          %108 = sbr.rel (%p106) target = $region24
        $region23: #{tpu_custom_call.1} parent=19 // pred_region
          %s109 = smul.u32 2, %s11
          %p110 = scmp.lt.s32.totalorder %s109, 3
          %s111 = scalar_select %p110, %s109, 3
          %s112 = smul.addr %s111, 24
          %s113 = smul.addr %s112, 8
          %s114 = scalar_lea.vmem %s0, %s113
          %s115 = smul.u32 2, %s11
        $region24: #{tpu_custom_call.1} parent=19 // pred_fallthru
          _
      $region20: #{tpu_custom_call.1} parent=5 // pred_fallthru
        _
      %p116 = scmp.le.s32.totalorder 1, %s11
      %p117 = scmp.lt.s32.totalorder %s11, 3
      %p118 = pnand %p116, %p117
      %p119 = pneg %p118
      // Predicated region
      $region25: #{tpu_custom_call.1} parent=5 // pred_check
        _
      $region26: #{tpu_custom_call.1} parent=5 // pred_check_branch
        %121 = sbr.rel (%p118) target = $region28
      $region27: #{tpu_custom_call.1} parent=5 // pred_region
        %s122 = ssub.s32 %s11, 1
        %s123 = smul.u32 2, %s16
        %p124 = scmp.lt.s32.totalorder %s123, 3
        %s125 = scalar_select %p124, %s123, 3
        %s126 = smul.addr %s125, 24
        %s127 = smul.addr %s126, 8
        %s128 = scalar_lea.vmem %s0, %s127
        %p129 = pneg %p37
        %p130 = pneg %p34
        %p131 = pneg %p58
        %p132 = pneg %p55
        %p133 = pneg %p84
        %p134 = pneg %p81
        %s135 = sand.u32 %s71, 1
        %s136 = scalar_lea.sflag [#allocation3], %s135
        %s137 = sand.u32 %s71, 1
        %s138 = smul.addr %s137, 64
        %s139 = scalar_lea.vmem [#allocation2], %s138
        %s140 = smul.u32 2, %s16
        %p141 = scmp.lt.s32.totalorder %s140, 3
        %s142 = scalar_select %p141, %s140, 3
        %s143 = smul.addr %s142, 24
        %s144 = smul.addr %s143, 8
        %s145 = scalar_lea.vmem %s0, %s144
        %s146 = smul.u32 2, %s16
        %v148 = vld [vmem:[%s145] sm:$0xff]
        %v149 = vld [vmem:[%s145 + $0x8] sm:$0xff]
        %v150 = vld [vmem:[%s145 + $0x10] sm:$0xff]
        %v151 = vld [vmem:[%s145 + $0x18] sm:$0xff]
        %v152 = vld [vmem:[%s145 + $0x20] sm:$0xff]
        %v153 = vld [vmem:[%s145 + $0x28] sm:$0xff]
        %v154 = vld [vmem:[%s145 + $0x30] sm:$0xff]
        %v155 = vld [vmem:[%s145 + $0x38] sm:$0xff]
        %v156 = vld [vmem:[%s145 + $0x40] sm:$0xff]
        %v157 = vld [vmem:[%s145 + $0x48] sm:$0xff]
        %v158 = vld [vmem:[%s145 + $0x50] sm:$0xff]
        %v159 = vld [vmem:[%s145 + $0x58] sm:$0xff]
        %v160 = vld [vmem:[%s145 + $0x60] sm:$0xff]
        %v161 = vld [vmem:[%s145 + $0x68] sm:$0xff]
        %v162 = vld [vmem:[%s145 + $0x70] sm:$0xff]
        %v163 = vld [vmem:[%s145 + $0x78] sm:$0xff]
        %v164 = vld [vmem:[%s145 + $0x80] sm:$0xff]
        %v165 = vld [vmem:[%s145 + $0x88] sm:$0xff]
        %v166 = vld [vmem:[%s145 + $0x90] sm:$0xff]
        %v167 = vld [vmem:[%s145 + $0x98] sm:$0xff]
        %v168 = vld [vmem:[%s145 + $0xa0] sm:$0xff]
        %v169 = vld [vmem:[%s145 + $0xa8] sm:$0xff]
        %v170 = vld [vmem:[%s145 + $0xb0] sm:$0xff]
        %v171 = vld [vmem:[%s145 + $0xb8] sm:$0xff]
        %v172 = vld [vmem:[%s145 + $0xc0] sm:$0xff]
        %v173 = vld [vmem:[%s145 + $0xc8] sm:$0xff]
        %v174 = vld [vmem:[%s145 + $0xd0] sm:$0xff]
        %v175 = vld [vmem:[%s145 + $0xd8] sm:$0xff]
        %v176 = vld [vmem:[%s145 + $0xe0] sm:$0xff]
        %v177 = vld [vmem:[%s145 + $0xe8] sm:$0xff]
        %v178 = vld [vmem:[%s145 + $0xf0] sm:$0xff]
        %v179 = vld [vmem:[%s145 + $0xf8] sm:$0xff]
        %v180 = vld [vmem:[%s145 + $0x100] sm:$0xff]
        %v181 = vld [vmem:[%s145 + $0x108] sm:$0xff]
        %v182 = vld [vmem:[%s145 + $0x110] sm:$0xff]
        %v183 = vld [vmem:[%s145 + $0x118] sm:$0xff]
        %v184 = vld [vmem:[%s145 + $0x120] sm:$0xff]
        %v185 = vld [vmem:[%s145 + $0x128] sm:$0xff]
        %v186 = vld [vmem:[%s145 + $0x130] sm:$0xff]
        %v187 = vld [vmem:[%s145 + $0x138] sm:$0xff]
        %v188 = vld [vmem:[%s145 + $0x140] sm:$0xff]
        %v189 = vld [vmem:[%s145 + $0x148] sm:$0xff]
        %v190 = vld [vmem:[%s145 + $0x150] sm:$0xff]
        %v191 = vld [vmem:[%s145 + $0x158] sm:$0xff]
        %v192 = vld [vmem:[%s145 + $0x160] sm:$0xff]
        %v193 = vld [vmem:[%s145 + $0x168] sm:$0xff]
        %v194 = vld [vmem:[%s145 + $0x170] sm:$0xff]
        %v195 = vld [vmem:[%s145 + $0x178] sm:$0xff]
        %v196 = vpack.c.bf16 %v151, %v148
        %v197 = vpack.c.bf16 %v152, %v149
        %v198 = vpack.c.bf16 %v153, %v150
        %v199 = vpack.c.bf16 %v157, %v154
        %v200 = vpack.c.bf16 %v158, %v155
        %v201 = vpack.c.bf16 %v159, %v156
        %v202 = vpack.c.bf16 %v163, %v160
        %v203 = vpack.c.bf16 %v164, %v161
        %v204 = vpack.c.bf16 %v165, %v162
        %v205 = vpack.c.bf16 %v169, %v166
        %v206 = vpack.c.bf16 %v170, %v167
        %v207 = vpack.c.bf16 %v171, %v168
        %v208 = vpack.c.bf16 %v175, %v172
        %v209 = vpack.c.bf16 %v176, %v173
        %v210 = vpack.c.bf16 %v177, %v174
        %v211 = vpack.c.bf16 %v181, %v178
        %v212 = vpack.c.bf16 %v182, %v179
        %v213 = vpack.c.bf16 %v183, %v180
        %v214 = vpack.c.bf16 %v187, %v184
        %v215 = vpack.c.bf16 %v188, %v185
        %v216 = vpack.c.bf16 %v189, %v186
        %v217 = vpack.c.bf16 %v193, %v190
        %v218 = vpack.c.bf16 %v194, %v191
        %v219 = vpack.c.bf16 %v195, %v192
        %v220 = vld [vmem:[%s1] sm:$0xff]
        %v221 = vld [vmem:[%s1 + $0x8] sm:$0xf]
        %v222 = vld [vmem:[%s1 + $0xc] sm:$0xff]
        %v223 = vld [vmem:[%s1 + $0x14] sm:$0xf]
        %v224 = vld [vmem:[%s1 + $0x18] sm:$0xff]
        %v225 = vld [vmem:[%s1 + $0x20] sm:$0xf]
        %v226 = vld [vmem:[%s1 + $0x24] sm:$0xff]
        %v227 = vld [vmem:[%s1 + $0x2c] sm:$0xf]
        %v228 = vld [vmem:[%s1 + $0x30] sm:$0xff]
        %v229 = vld [vmem:[%s1 + $0x38] sm:$0xf]
        %v230 = vld [vmem:[%s1 + $0x3c] sm:$0xff]
        %v231 = vld [vmem:[%s1 + $0x44] sm:$0xf]
        %v232 = vld [vmem:[%s1 + $0x48] sm:$0xff]
        %v233 = vld [vmem:[%s1 + $0x50] sm:$0xf]
        %v234 = vld [vmem:[%s1 + $0x54] sm:$0xff]
        %v235 = vld [vmem:[%s1 + $0x5c] sm:$0xf]
        %v236 = vld [vmem:[%s1 + $0x60] sm:$0xff]
        %v237 = vld [vmem:[%s1 + $0x68] sm:$0xf]
        %v238 = vld [vmem:[%s1 + $0x6c] sm:$0xff]
        %v239 = vld [vmem:[%s1 + $0x74] sm:$0xf]
        %v240 = vld [vmem:[%s1 + $0x78] sm:$0xff]
        %v241 = vld [vmem:[%s1 + $0x80] sm:$0xf]
        %v242 = vld [vmem:[%s1 + $0x84] sm:$0xff]
        %v243 = vld [vmem:[%s1 + $0x8c] sm:$0xf]
        %v244 = vld [vmem:[%s1 + $0x90] sm:$0xff]
        %v245 = vld [vmem:[%s1 + $0x98] sm:$0xf]
        %v246 = vld [vmem:[%s1 + $0x9c] sm:$0xff]
        %v247 = vld [vmem:[%s1 + $0xa4] sm:$0xf]
        %v248 = vld [vmem:[%s1 + $0xa8] sm:$0xff]
        %v249 = vld [vmem:[%s1 + $0xb0] sm:$0xf]
        %v250 = vld [vmem:[%s1 + $0xb4] sm:$0xff]
        %v251 = vld [vmem:[%s1 + $0xbc] sm:$0xf]
        %v252 = vld [vmem:[%s1 + $0xc0] sm:$0xff]
        %v253 = vld [vmem:[%s1 + $0xc8] sm:$0xf]
        %v254 = vld [vmem:[%s1 + $0xcc] sm:$0xff]
        %v255 = vld [vmem:[%s1 + $0xd4] sm:$0xf]
        %v256 = vld [vmem:[%s1 + $0xd8] sm:$0xff]
        %v257 = vld [vmem:[%s1 + $0xe0] sm:$0xf]
        %v258 = vld [vmem:[%s1 + $0xe4] sm:$0xff]
        %v259 = vld [vmem:[%s1 + $0xec] sm:$0xf]
        %v260 = vld [vmem:[%s1 + $0xf0] sm:$0xff]
        %v261 = vld [vmem:[%s1 + $0xf8] sm:$0xf]
        %v262 = vld [vmem:[%s1 + $0xfc] sm:$0xff]
        %v263 = vld [vmem:[%s1 + $0x104] sm:$0xf]
        %v264 = vld [vmem:[%s1 + $0x108] sm:$0xff]
        %v265 = vld [vmem:[%s1 + $0x110] sm:$0xf]
        %v266 = vld [vmem:[%s1 + $0x114] sm:$0xff]
        %v267 = vld [vmem:[%s1 + $0x11c] sm:$0xf]
        %v268 = vld [vmem:[%s1 + $0x120] sm:$0xff]
        %v269 = vld [vmem:[%s1 + $0x128] sm:$0xf]
        %v270 = vld [vmem:[%s1 + $0x12c] sm:$0xff]
        %v271 = vld [vmem:[%s1 + $0x134] sm:$0xf]
        %v272 = vld [vmem:[%s1 + $0x138] sm:$0xff]
        %v273 = vld [vmem:[%s1 + $0x140] sm:$0xf]
        %v274 = vld [vmem:[%s1 + $0x144] sm:$0xff]
        %v275 = vld [vmem:[%s1 + $0x14c] sm:$0xf]
        %v276 = vld [vmem:[%s1 + $0x150] sm:$0xff]
        %v277 = vld [vmem:[%s1 + $0x158] sm:$0xf]
        %v278 = vld [vmem:[%s1 + $0x15c] sm:$0xff]
        %v279 = vld [vmem:[%s1 + $0x164] sm:$0xf]
        %v280 = vld [vmem:[%s1 + $0x168] sm:$0xff]
        %v281 = vld [vmem:[%s1 + $0x170] sm:$0xf]
        %v282 = vld [vmem:[%s1 + $0x174] sm:$0xff]
        %v283 = vld [vmem:[%s1 + $0x17c] sm:$0xf]
        %v284 = vld [vmem:[%s1 + $0x180] sm:$0xff]
        %v285 = vld [vmem:[%s1 + $0x188] sm:$0xf]
        %v286 = vld [vmem:[%s1 + $0x18c] sm:$0xff]
        %v287 = vld [vmem:[%s1 + $0x194] sm:$0xf]
        %v288 = vld [vmem:[%s1 + $0x198] sm:$0xff]
        %v289 = vld [vmem:[%s1 + $0x1a0] sm:$0xf]
        %v290 = vld [vmem:[%s1 + $0x1a4] sm:$0xff]
        %v291 = vld [vmem:[%s1 + $0x1ac] sm:$0xf]
        %v292 = vld [vmem:[%s1 + $0x1b0] sm:$0xff]
        %v293 = vld [vmem:[%s1 + $0x1b8] sm:$0xf]
        %v294 = vld [vmem:[%s1 + $0x1bc] sm:$0xff]
        %v295 = vld [vmem:[%s1 + $0x1c4] sm:$0xf]
        %v296 = vld [vmem:[%s1 + $0x1c8] sm:$0xff]
        %v297 = vld [vmem:[%s1 + $0x1d0] sm:$0xf]
        %v298 = vld [vmem:[%s1 + $0x1d4] sm:$0xff]
        %v299 = vld [vmem:[%s1 + $0x1dc] sm:$0xf]
        %v300 = vld [vmem:[%s1 + $0x1e0] sm:$0xff]
        %v301 = vld [vmem:[%s1 + $0x1e8] sm:$0xf]
        %v302 = vld [vmem:[%s1 + $0x1ec] sm:$0xff]
        %v303 = vld [vmem:[%s1 + $0x1f4] sm:$0xf]
        %v304 = vld [vmem:[%s1 + $0x1f8] sm:$0xff]
        %v305 = vld [vmem:[%s1 + $0x200] sm:$0xf]
        %v306 = vld [vmem:[%s1 + $0x204] sm:$0xff]
        %v307 = vld [vmem:[%s1 + $0x20c] sm:$0xf]
        %v308 = vld [vmem:[%s1 + $0x210] sm:$0xff]
        %v309 = vld [vmem:[%s1 + $0x218] sm:$0xf]
        %v310 = vld [vmem:[%s1 + $0x21c] sm:$0xff]
        %v311 = vld [vmem:[%s1 + $0x224] sm:$0xf]
        %v312 = vld [vmem:[%s1 + $0x228] sm:$0xff]
        %v313 = vld [vmem:[%s1 + $0x230] sm:$0xf]
        %v314 = vld [vmem:[%s1 + $0x234] sm:$0xff]
        %v315 = vld [vmem:[%s1 + $0x23c] sm:$0xf]
        %v412 = vunpack.c.l.b16 %v220
        %v413 = vunpack.c.h.b16 %v220
        %v414 = vunpack.c.l.b16 %v221
        %v415 = vunpack.c.l.b16 %v222
        %v416 = vunpack.c.h.b16 %v222
        %v417 = vunpack.c.l.b16 %v223
        %v418 = vunpack.c.l.b16 %v224
        %v419 = vunpack.c.h.b16 %v224
        %v420 = vunpack.c.l.b16 %v225
        %v421 = vunpack.c.l.b16 %v226
        %v422 = vunpack.c.h.b16 %v226
        %v423 = vunpack.c.l.b16 %v227
        %v424 = vunpack.c.l.b16 %v228
        %v425 = vunpack.c.h.b16 %v228
        %v426 = vunpack.c.l.b16 %v229
        %v427 = vunpack.c.l.b16 %v230
        %v428 = vunpack.c.h.b16 %v230
        %v429 = vunpack.c.l.b16 %v231
        %v430 = vunpack.c.l.b16 %v232
        %v431 = vunpack.c.h.b16 %v232
        %v432 = vunpack.c.l.b16 %v233
        %v433 = vunpack.c.l.b16 %v234
        %v434 = vunpack.c.h.b16 %v234
        %v435 = vunpack.c.l.b16 %v235
        %v436 = vunpack.c.l.b16 %v236
        %v437 = vunpack.c.h.b16 %v236
        %v438 = vunpack.c.l.b16 %v237
        %v439 = vunpack.c.l.b16 %v238
        %v440 = vunpack.c.h.b16 %v238
        %v441 = vunpack.c.l.b16 %v239
        %v442 = vunpack.c.l.b16 %v240
        %v443 = vunpack.c.h.b16 %v240
        %v444 = vunpack.c.l.b16 %v241
        %v445 = vunpack.c.l.b16 %v242
        %v446 = vunpack.c.h.b16 %v242
        %v447 = vunpack.c.l.b16 %v243
        %v448 = vunpack.c.l.b16 %v244
        %v449 = vunpack.c.h.b16 %v244
        %v450 = vunpack.c.l.b16 %v245
        %v451 = vunpack.c.l.b16 %v246
        %v452 = vunpack.c.h.b16 %v246
        %v453 = vunpack.c.l.b16 %v247
        %v454 = vunpack.c.l.b16 %v248
        %v455 = vunpack.c.h.b16 %v248
        %v456 = vunpack.c.l.b16 %v249
        %v457 = vunpack.c.l.b16 %v250
        %v458 = vunpack.c.h.b16 %v250
        %v459 = vunpack.c.l.b16 %v251
        %v460 = vunpack.c.l.b16 %v252
        %v461 = vunpack.c.h.b16 %v252
        %v462 = vunpack.c.l.b16 %v253
        %v463 = vunpack.c.l.b16 %v254
        %v464 = vunpack.c.h.b16 %v254
        %v465 = vunpack.c.l.b16 %v255
        %v466 = vunpack.c.l.b16 %v256
        %v467 = vunpack.c.h.b16 %v256
        %v468 = vunpack.c.l.b16 %v257
        %v469 = vunpack.c.l.b16 %v258
        %v470 = vunpack.c.h.b16 %v258
        %v471 = vunpack.c.l.b16 %v259
        %v472 = vunpack.c.l.b16 %v260
        %v473 = vunpack.c.h.b16 %v260
        %v474 = vunpack.c.l.b16 %v261
        %v475 = vunpack.c.l.b16 %v262
        %v476 = vunpack.c.h.b16 %v262
        %v477 = vunpack.c.l.b16 %v263
        %v478 = vunpack.c.l.b16 %v264
        %v479 = vunpack.c.h.b16 %v264
        %v480 = vunpack.c.l.b16 %v265
        %v481 = vunpack.c.l.b16 %v266
        %v482 = vunpack.c.h.b16 %v266
        %v483 = vunpack.c.l.b16 %v267
        %v484 = vunpack.c.l.b16 %v268
        %v485 = vunpack.c.h.b16 %v268
        %v486 = vunpack.c.l.b16 %v269
        %v487 = vunpack.c.l.b16 %v270
        %v488 = vunpack.c.h.b16 %v270
        %v489 = vunpack.c.l.b16 %v271
        %v490 = vunpack.c.l.b16 %v272
        %v491 = vunpack.c.h.b16 %v272
        %v492 = vunpack.c.l.b16 %v273
        %v493 = vunpack.c.l.b16 %v274
        %v494 = vunpack.c.h.b16 %v274
        %v495 = vunpack.c.l.b16 %v275
        %v496 = vunpack.c.l.b16 %v276
        %v497 = vunpack.c.h.b16 %v276
        %v498 = vunpack.c.l.b16 %v277
        %v499 = vunpack.c.l.b16 %v278
        %v500 = vunpack.c.h.b16 %v278
        %v501 = vunpack.c.l.b16 %v279
        %v502 = vunpack.c.l.b16 %v280
        %v503 = vunpack.c.h.b16 %v280
        %v504 = vunpack.c.l.b16 %v281
        %v505 = vunpack.c.l.b16 %v282
        %v506 = vunpack.c.h.b16 %v282
        %v507 = vunpack.c.l.b16 %v283
        %v508 = vunpack.c.l.b16 %v284
        %v509 = vunpack.c.h.b16 %v284
        %v510 = vunpack.c.l.b16 %v285
        %v511 = vunpack.c.l.b16 %v286
        %v512 = vunpack.c.h.b16 %v286
        %v513 = vunpack.c.l.b16 %v287
        %v514 = vunpack.c.l.b16 %v288
        %v515 = vunpack.c.h.b16 %v288
        %v516 = vunpack.c.l.b16 %v289
        %v517 = vunpack.c.l.b16 %v290
        %v518 = vunpack.c.h.b16 %v290
        %v519 = vunpack.c.l.b16 %v291
        %v520 = vunpack.c.l.b16 %v292
        %v521 = vunpack.c.h.b16 %v292
        %v522 = vunpack.c.l.b16 %v293
        %v523 = vunpack.c.l.b16 %v294
        %v524 = vunpack.c.h.b16 %v294
        %v525 = vunpack.c.l.b16 %v295
        %v526 = vunpack.c.l.b16 %v296
        %v527 = vunpack.c.h.b16 %v296
        %v528 = vunpack.c.l.b16 %v297
        %v529 = vunpack.c.l.b16 %v298
        %v530 = vunpack.c.h.b16 %v298
        %v531 = vunpack.c.l.b16 %v299
        %v532 = vunpack.c.l.b16 %v300
        %v533 = vunpack.c.h.b16 %v300
        %v534 = vunpack.c.l.b16 %v301
        %v535 = vunpack.c.l.b16 %v302
        %v536 = vunpack.c.h.b16 %v302
        %v537 = vunpack.c.l.b16 %v303
        %v538 = vunpack.c.l.b16 %v304
        %v539 = vunpack.c.h.b16 %v304
        %v540 = vunpack.c.l.b16 %v305
        %v541 = vunpack.c.l.b16 %v306
        %v542 = vunpack.c.h.b16 %v306
        %v543 = vunpack.c.l.b16 %v307
        %v544 = vunpack.c.l.b16 %v308
        %v545 = vunpack.c.h.b16 %v308
        %v546 = vunpack.c.l.b16 %v309
        %v547 = vunpack.c.l.b16 %v310
        %v548 = vunpack.c.h.b16 %v310
        %v549 = vunpack.c.l.b16 %v311
        %v550 = vunpack.c.l.b16 %v312
        %v551 = vunpack.c.h.b16 %v312
        %v552 = vunpack.c.l.b16 %v313
        %v553 = vunpack.c.l.b16 %v314
        %v554 = vunpack.c.h.b16 %v314
        %v555 = vunpack.c.l.b16 %v315
        %v556 = vpack.c.b16 %v415, %v412
        %v557 = vpack.c.b16 %v416, %v413
        %v558 = vpack.c.b16 %v417, %v414
        %v559 = vpack.c.b16 %v421, %v418
        %v560 = vpack.c.b16 %v422, %v419
        %v561 = vpack.c.b16 %v423, %v420
        %v562 = vpack.c.b16 %v427, %v424
        %v563 = vpack.c.b16 %v428, %v425
        %v564 = vpack.c.b16 %v429, %v426
        %v565 = vpack.c.b16 %v433, %v430
        %v566 = vpack.c.b16 %v434, %v431
        %v567 = vpack.c.b16 %v435, %v432
        %v568 = vpack.c.b16 %v439, %v436
        %v569 = vpack.c.b16 %v440, %v437
        %v570 = vpack.c.b16 %v441, %v438
        %v571 = vpack.c.b16 %v445, %v442
        %v572 = vpack.c.b16 %v446, %v443
        %v573 = vpack.c.b16 %v447, %v444
        %v574 = vpack.c.b16 %v451, %v448
        %v575 = vpack.c.b16 %v452, %v449
        %v576 = vpack.c.b16 %v453, %v450
        %v577 = vpack.c.b16 %v457, %v454
        %v578 = vpack.c.b16 %v458, %v455
        %v579 = vpack.c.b16 %v459, %v456
        %v580 = vpack.c.b16 %v463, %v460
        %v581 = vpack.c.b16 %v464, %v461
        %v582 = vpack.c.b16 %v465, %v462
        %v583 = vpack.c.b16 %v469, %v466
        %v584 = vpack.c.b16 %v470, %v467
        %v585 = vpack.c.b16 %v471, %v468
        %v586 = vpack.c.b16 %v475, %v472
        %v587 = vpack.c.b16 %v476, %v473
        %v588 = vpack.c.b16 %v477, %v474
        %v589 = vpack.c.b16 %v481, %v478
        %v590 = vpack.c.b16 %v482, %v479
        %v591 = vpack.c.b16 %v483, %v480
        %v592 = vpack.c.b16 %v487, %v484
        %v593 = vpack.c.b16 %v488, %v485
        %v594 = vpack.c.b16 %v489, %v486
        %v595 = vpack.c.b16 %v493, %v490
        %v596 = vpack.c.b16 %v494, %v491
        %v597 = vpack.c.b16 %v495, %v492
        %v598 = vpack.c.b16 %v499, %v496
        %v599 = vpack.c.b16 %v500, %v497
        %v600 = vpack.c.b16 %v501, %v498
        %v601 = vpack.c.b16 %v505, %v502
        %v602 = vpack.c.b16 %v506, %v503
        %v603 = vpack.c.b16 %v507, %v504
        %v604 = vpack.c.b16 %v511, %v508
        %v605 = vpack.c.b16 %v512, %v509
        %v606 = vpack.c.b16 %v513, %v510
        %v607 = vpack.c.b16 %v517, %v514
        %v608 = vpack.c.b16 %v518, %v515
        %v609 = vpack.c.b16 %v519, %v516
        %v610 = vpack.c.b16 %v523, %v520
        %v611 = vpack.c.b16 %v524, %v521
        %v612 = vpack.c.b16 %v525, %v522
        %v613 = vpack.c.b16 %v529, %v526
        %v614 = vpack.c.b16 %v530, %v527
        %v615 = vpack.c.b16 %v531, %v528
        %v616 = vpack.c.b16 %v535, %v532
        %v617 = vpack.c.b16 %v536, %v533
        %v618 = vpack.c.b16 %v537, %v534
        %v619 = vpack.c.b16 %v541, %v538
        %v620 = vpack.c.b16 %v542, %v539
        %v621 = vpack.c.b16 %v543, %v540
        %v622 = vpack.c.b16 %v547, %v544
        %v623 = vpack.c.b16 %v548, %v545
        %v624 = vpack.c.b16 %v549, %v546
        %v625 = vpack.c.b16 %v553, %v550
        %v626 = vpack.c.b16 %v554, %v551
        %v627 = vpack.c.b16 %v555, %v552
        %700 = vmatpush.bf16.msra.mxu0 %v577
        %701 = vmatpush.bf16.msra.mxu0 %v574
        %702 = vmatpush.bf16.msra.mxu0 %v571
        %703 = vmatpush.bf16.msra.mxu0 %v568
        %704 = vmatpush.bf16.msra.mxu0 %v565
        %705 = vmatpush.bf16.msra.mxu0 %v562
        %706 = vmatpush.bf16.msra.mxu0 %v559
        %707 = vmatpush.bf16.msra.mxu0 %v556
        %708 = vmatmul.bf16.gmra.mxu0 %v196
        %v709 = vpop.f32.mrf.mxu0
        %v710 = vadd.f32 0.0, %v709
        %v711 = vpop.f32.mrf.mxu0
        %v712 = vadd.f32 0.0, %v711
        %713 = vmatmul.bf16.gmra.mxu0 %v199
        %v714 = vpop.f32.mrf.mxu0
        %v715 = vadd.f32 0.0, %v714
        %v716 = vpop.f32.mrf.mxu0
        %v717 = vadd.f32 0.0, %v716
        %718 = vmatmul.bf16.gmra.mxu0 %v202
        %v719 = vpop.f32.mrf.mxu0
        %v720 = vadd.f32 0.0, %v719
        %v721 = vpop.f32.mrf.mxu0
        %v722 = vadd.f32 0.0, %v721
        %723 = vmatmul.bf16.gmra.mxu0 %v205
        %v724 = vpop.f32.mrf.mxu0
        %v725 = vadd.f32 0.0, %v724
        %v726 = vpop.f32.mrf.mxu0
        %v727 = vadd.f32 0.0, %v726
        %728 = vmatmul.bf16.gmra.mxu0 %v208
        %v729 = vpop.f32.mrf.mxu0
        %v730 = vadd.f32 0.0, %v729
        %v731 = vpop.f32.mrf.mxu0
        %v732 = vadd.f32 0.0, %v731
        %733 = vmatmul.bf16.gmra.mxu0 %v211
        %v734 = vpop.f32.mrf.mxu0
        %v735 = vadd.f32 0.0, %v734
        %v736 = vpop.f32.mrf.mxu0
        %v737 = vadd.f32 0.0, %v736
        %738 = vmatmul.bf16.gmra.mxu0 %v214
        %v739 = vpop.f32.mrf.mxu0
        %v740 = vadd.f32 0.0, %v739
        %v741 = vpop.f32.mrf.mxu0
        %v742 = vadd.f32 0.0, %v741
        %743 = vmatmul.bf16.gmra.mxu0 %v217
        %v744 = vpop.f32.mrf.mxu0
        %v745 = vadd.f32 0.0, %v744
        %v746 = vpop.f32.mrf.mxu0
        %v747 = vadd.f32 0.0, %v746
        %748 = vdwg.mxu0
        %749 = vmatpush.bf16.msra.mxu0 %v601
        %750 = vmatpush.bf16.msra.mxu0 %v598
        %751 = vmatpush.bf16.msra.mxu0 %v595
        %752 = vmatpush.bf16.msra.mxu0 %v592
        %753 = vmatpush.bf16.msra.mxu0 %v589
        %754 = vmatpush.bf16.msra.mxu0 %v586
        %755 = vmatpush.bf16.msra.mxu0 %v583
        %756 = vmatpush.bf16.msra.mxu0 %v580
        %757 = vmatmul.bf16.gmra.mxu0 %v197
        %v758 = vpop.f32.mrf.mxu0
        %v759 = vadd.f32 %v710, %v758
        %v760 = vpop.f32.mrf.mxu0
        %v761 = vadd.f32 %v712, %v760
        %762 = vmatmul.bf16.gmra.mxu0 %v200
        %v763 = vpop.f32.mrf.mxu0
        %v764 = vadd.f32 %v715, %v763
        %v765 = vpop.f32.mrf.mxu0
        %v766 = vadd.f32 %v717, %v765
        %767 = vmatmul.bf16.gmra.mxu0 %v203
        %v768 = vpop.f32.mrf.mxu0
        %v769 = vadd.f32 %v720, %v768
        %v770 = vpop.f32.mrf.mxu0
        %v771 = vadd.f32 %v722, %v770
        %772 = vmatmul.bf16.gmra.mxu0 %v206
        %v773 = vpop.f32.mrf.mxu0
        %v774 = vadd.f32 %v725, %v773
        %v775 = vpop.f32.mrf.mxu0
        %v776 = vadd.f32 %v727, %v775
        %777 = vmatmul.bf16.gmra.mxu0 %v209
        %v778 = vpop.f32.mrf.mxu0
        %v779 = vadd.f32 %v730, %v778
        %v780 = vpop.f32.mrf.mxu0
        %v781 = vadd.f32 %v732, %v780
        %782 = vmatmul.bf16.gmra.mxu0 %v212
        %v783 = vpop.f32.mrf.mxu0
        %v784 = vadd.f32 %v735, %v783
        %v785 = vpop.f32.mrf.mxu0
        %v786 = vadd.f32 %v737, %v785
        %787 = vmatmul.bf16.gmra.mxu0 %v215
        %v788 = vpop.f32.mrf.mxu0
        %v789 = vadd.f32 %v740, %v788
        %v790 = vpop.f32.mrf.mxu0
        %v791 = vadd.f32 %v742, %v790
        %792 = vmatmul.bf16.gmra.mxu0 %v218
        %v793 = vpop.f32.mrf.mxu0
        %v794 = vadd.f32 %v745, %v793
        %v795 = vpop.f32.mrf.mxu0
        %v796 = vadd.f32 %v747, %v795
        %797 = vdwg.mxu0
        %798 = vmatpush.bf16.msra.mxu0 %v625
        %799 = vmatpush.bf16.msra.mxu0 %v622
        %800 = vmatpush.bf16.msra.mxu0 %v619
        %801 = vmatpush.bf16.msra.mxu0 %v616
        %802 = vmatpush.bf16.msra.mxu0 %v613
        %803 = vmatpush.bf16.msra.mxu0 %v610
        %804 = vmatpush.bf16.msra.mxu0 %v607
        %805 = vmatpush.bf16.msra.mxu0 %v604
        %806 = vmatmul.bf16.gmra.mxu0 %v198
        %v807 = vpop.f32.mrf.mxu0
        %v808 = vadd.f32 %v759, %v807
        %v809 = vpop.f32.mrf.mxu0
        %v810 = vadd.f32 %v761, %v809
        %811 = vmatmul.bf16.gmra.mxu0 %v201
        %v812 = vpop.f32.mrf.mxu0
        %v813 = vadd.f32 %v764, %v812
        %v814 = vpop.f32.mrf.mxu0
        %v815 = vadd.f32 %v766, %v814
        %816 = vmatmul.bf16.gmra.mxu0 %v204
        %v817 = vpop.f32.mrf.mxu0
        %v818 = vadd.f32 %v769, %v817
        %v819 = vpop.f32.mrf.mxu0
        %v820 = vadd.f32 %v771, %v819
        %821 = vmatmul.bf16.gmra.mxu0 %v207
        %v822 = vpop.f32.mrf.mxu0
        %v823 = vadd.f32 %v774, %v822
        %v824 = vpop.f32.mrf.mxu0
        %v825 = vadd.f32 %v776, %v824
        %826 = vmatmul.bf16.gmra.mxu0 %v210
        %v827 = vpop.f32.mrf.mxu0
        %v828 = vadd.f32 %v779, %v827
        %v829 = vpop.f32.mrf.mxu0
        %v830 = vadd.f32 %v781, %v829
        %831 = vmatmul.bf16.gmra.mxu0 %v213
        %v832 = vpop.f32.mrf.mxu0
        %v833 = vadd.f32 %v784, %v832
        %v834 = vpop.f32.mrf.mxu0
        %v835 = vadd.f32 %v786, %v834
        %836 = vmatmul.bf16.gmra.mxu0 %v216
        %v837 = vpop.f32.mrf.mxu0
        %v838 = vadd.f32 %v789, %v837
        %v839 = vpop.f32.mrf.mxu0
        %v840 = vadd.f32 %v791, %v839
        %841 = vmatmul.bf16.gmra.mxu0 %v219
        %v842 = vpop.f32.mrf.mxu0
        %v843 = vadd.f32 %v794, %v842
        %v844 = vpop.f32.mrf.mxu0
        %v845 = vadd.f32 %v796, %v844
        %846 = vdwg.mxu0
        %847 = vmatpush.bf16.msra.mxu0 %v578
        %848 = vmatpush.bf16.msra.mxu0 %v575
        %849 = vmatpush.bf16.msra.mxu0 %v572
        %850 = vmatpush.bf16.msra.mxu0 %v569
        %851 = vmatpush.bf16.msra.mxu0 %v566
        %852 = vmatpush.bf16.msra.mxu0 %v563
        %853 = vmatpush.bf16.msra.mxu0 %v560
        %854 = vmatpush.bf16.msra.mxu0 %v557
        %855 = vmatmul.bf16.gmra.mxu0 %v196
        %v856 = vpop.f32.mrf.mxu0
        %v857 = vadd.f32 0.0, %v856
        %v858 = vpop.f32.mrf.mxu0
        %v859 = vadd.f32 0.0, %v858
        %860 = vmatmul.bf16.gmra.mxu0 %v199
        %v861 = vpop.f32.mrf.mxu0
        %v862 = vadd.f32 0.0, %v861
        %v863 = vpop.f32.mrf.mxu0
        %v864 = vadd.f32 0.0, %v863
        %865 = vmatmul.bf16.gmra.mxu0 %v202
        %v866 = vpop.f32.mrf.mxu0
        %v867 = vadd.f32 0.0, %v866
        %v868 = vpop.f32.mrf.mxu0
        %v869 = vadd.f32 0.0, %v868
        %870 = vmatmul.bf16.gmra.mxu0 %v205
        %v871 = vpop.f32.mrf.mxu0
        %v872 = vadd.f32 0.0, %v871
        %v873 = vpop.f32.mrf.mxu0
        %v874 = vadd.f32 0.0, %v873
        %875 = vmatmul.bf16.gmra.mxu0 %v208
        %v876 = vpop.f32.mrf.mxu0
        %v877 = vadd.f32 0.0, %v876
        %v878 = vpop.f32.mrf.mxu0
        %v879 = vadd.f32 0.0, %v878
        %880 = vmatmul.bf16.gmra.mxu0 %v211
        %v881 = vpop.f32.mrf.mxu0
        %v882 = vadd.f32 0.0, %v881
        %v883 = vpop.f32.mrf.mxu0
        %v884 = vadd.f32 0.0, %v883
        %885 = vmatmul.bf16.gmra.mxu0 %v214
        %v886 = vpop.f32.mrf.mxu0
        %v887 = vadd.f32 0.0, %v886
        %v888 = vpop.f32.mrf.mxu0
        %v889 = vadd.f32 0.0, %v888
        %890 = vmatmul.bf16.gmra.mxu0 %v217
        %v891 = vpop.f32.mrf.mxu0
        %v892 = vadd.f32 0.0, %v891
        %v893 = vpop.f32.mrf.mxu0
        %v894 = vadd.f32 0.0, %v893
        %895 = vdwg.mxu0
        %896 = vmatpush.bf16.msra.mxu0 %v602
        %897 = vmatpush.bf16.msra.mxu0 %v599
        %898 = vmatpush.bf16.msra.mxu0 %v596
        %899 = vmatpush.bf16.msra.mxu0 %v593
        %900 = vmatpush.bf16.msra.mxu0 %v590
        %901 = vmatpush.bf16.msra.mxu0 %v587
        %902 = vmatpush.bf16.msra.mxu0 %v584
        %903 = vmatpush.bf16.msra.mxu0 %v581
        %904 = vmatmul.bf16.gmra.mxu0 %v197
        %v905 = vpop.f32.mrf.mxu0
        %v906 = vadd.f32 %v857, %v905
        %v907 = vpop.f32.mrf.mxu0
        %v908 = vadd.f32 %v859, %v907
        %909 = vmatmul.bf16.gmra.mxu0 %v200
        %v910 = vpop.f32.mrf.mxu0
        %v911 = vadd.f32 %v862, %v910
        %v912 = vpop.f32.mrf.mxu0
        %v913 = vadd.f32 %v864, %v912
        %914 = vmatmul.bf16.gmra.mxu0 %v203
        %v915 = vpop.f32.mrf.mxu0
        %v916 = vadd.f32 %v867, %v915
        %v917 = vpop.f32.mrf.mxu0
        %v918 = vadd.f32 %v869, %v917
        %919 = vmatmul.bf16.gmra.mxu0 %v206
        %v920 = vpop.f32.mrf.mxu0
        %v921 = vadd.f32 %v872, %v920
        %v922 = vpop.f32.mrf.mxu0
        %v923 = vadd.f32 %v874, %v922
        %924 = vmatmul.bf16.gmra.mxu0 %v209
        %v925 = vpop.f32.mrf.mxu0
        %v926 = vadd.f32 %v877, %v925
        %v927 = vpop.f32.mrf.mxu0
        %v928 = vadd.f32 %v879, %v927
        %929 = vmatmul.bf16.gmra.mxu0 %v212
        %v930 = vpop.f32.mrf.mxu0
        %v931 = vadd.f32 %v882, %v930
        %v932 = vpop.f32.mrf.mxu0
        %v933 = vadd.f32 %v884, %v932
        %934 = vmatmul.bf16.gmra.mxu0 %v215
        %v935 = vpop.f32.mrf.mxu0
        %v936 = vadd.f32 %v887, %v935
        %v937 = vpop.f32.mrf.mxu0
        %v938 = vadd.f32 %v889, %v937
        %939 = vmatmul.bf16.gmra.mxu0 %v218
        %v940 = vpop.f32.mrf.mxu0
        %v941 = vadd.f32 %v892, %v940
        %v942 = vpop.f32.mrf.mxu0
        %v943 = vadd.f32 %v894, %v942
        %944 = vdwg.mxu0
        %945 = vmatpush.bf16.msra.mxu0 %v626
        %946 = vmatpush.bf16.msra.mxu0 %v623
        %947 = vmatpush.bf16.msra.mxu0 %v620
        %948 = vmatpush.bf16.msra.mxu0 %v617
        %949 = vmatpush.bf16.msra.mxu0 %v614
        %950 = vmatpush.bf16.msra.mxu0 %v611
        %951 = vmatpush.bf16.msra.mxu0 %v608
        %952 = vmatpush.bf16.msra.mxu0 %v605
        %953 = vmatmul.bf16.gmra.mxu0 %v198
        %v954 = vpop.f32.mrf.mxu0
        %v955 = vadd.f32 %v906, %v954
        %v956 = vpop.f32.mrf.mxu0
        %v957 = vadd.f32 %v908, %v956
        %958 = vmatmul.bf16.gmra.mxu0 %v201
        %v959 = vpop.f32.mrf.mxu0
        %v960 = vadd.f32 %v911, %v959
        %v961 = vpop.f32.mrf.mxu0
        %v962 = vadd.f32 %v913, %v961
        %963 = vmatmul.bf16.gmra.mxu0 %v204
        %v964 = vpop.f32.mrf.mxu0
        %v965 = vadd.f32 %v916, %v964
        %v966 = vpop.f32.mrf.mxu0
        %v967 = vadd.f32 %v918, %v966
        %968 = vmatmul.bf16.gmra.mxu0 %v207
        %v969 = vpop.f32.mrf.mxu0
        %v970 = vadd.f32 %v921, %v969
        %v971 = vpop.f32.mrf.mxu0
        %v972 = vadd.f32 %v923, %v971
        %973 = vmatmul.bf16.gmra.mxu0 %v210
        %v974 = vpop.f32.mrf.mxu0
        %v975 = vadd.f32 %v926, %v974
        %v976 = vpop.f32.mrf.mxu0
        %v977 = vadd.f32 %v928, %v976
        %978 = vmatmul.bf16.gmra.mxu0 %v213
        %v979 = vpop.f32.mrf.mxu0
        %v980 = vadd.f32 %v931, %v979
        %v981 = vpop.f32.mrf.mxu0
        %v982 = vadd.f32 %v933, %v981
        %983 = vmatmul.bf16.gmra.mxu0 %v216
        %v984 = vpop.f32.mrf.mxu0
        %v985 = vadd.f32 %v936, %v984
        %v986 = vpop.f32.mrf.mxu0
        %v987 = vadd.f32 %v938, %v986
        %988 = vmatmul.bf16.gmra.mxu0 %v219
        %v989 = vpop.f32.mrf.mxu0
        %v990 = vadd.f32 %v941, %v989
        %v991 = vpop.f32.mrf.mxu0
        %v992 = vadd.f32 %v943, %v991
        %993 = vdwg.mxu0
        %994 = vmatpush.bf16.msra.mxu0 %v579
        %995 = vmatpush.bf16.msra.mxu0 %v576
        %996 = vmatpush.bf16.msra.mxu0 %v573
        %997 = vmatpush.bf16.msra.mxu0 %v570
        %998 = vmatpush.bf16.msra.mxu0 %v567
        %999 = vmatpush.bf16.msra.mxu0 %v564
        %1000 = vmatpush.bf16.msra.mxu0 %v561
        %1001 = vmatpush.bf16.msra.mxu0 %v558
        %1002 = vmatmul.bf16.gmra.mxu0 %v196
        %v1003 = vpop.f32.mrf.mxu0
        %v1004 = vadd.f32 0.0, %v1003
        %v1005 = vpop.f32.mrf.mxu0
        %v1006 = vadd.f32 0.0, %v1005
        %1007 = vmatmul.bf16.gmra.mxu0 %v199
        %v1008 = vpop.f32.mrf.mxu0
        %v1009 = vadd.f32 0.0, %v1008
        %v1010 = vpop.f32.mrf.mxu0
        %v1011 = vadd.f32 0.0, %v1010
        %1012 = vmatmul.bf16.gmra.mxu0 %v202
        %v1013 = vpop.f32.mrf.mxu0
        %v1014 = vadd.f32 0.0, %v1013
        %v1015 = vpop.f32.mrf.mxu0
        %v1016 = vadd.f32 0.0, %v1015
        %1017 = vmatmul.bf16.gmra.mxu0 %v205
        %v1018 = vpop.f32.mrf.mxu0
        %v1019 = vadd.f32 0.0, %v1018
        %v1020 = vpop.f32.mrf.mxu0
        %v1021 = vadd.f32 0.0, %v1020
        %1022 = vmatmul.bf16.gmra.mxu0 %v208
        %v1023 = vpop.f32.mrf.mxu0
        %v1024 = vadd.f32 0.0, %v1023
        %v1025 = vpop.f32.mrf.mxu0
        %v1026 = vadd.f32 0.0, %v1025
        %1027 = vmatmul.bf16.gmra.mxu0 %v211
        %v1028 = vpop.f32.mrf.mxu0
        %v1029 = vadd.f32 0.0, %v1028
        %v1030 = vpop.f32.mrf.mxu0
        %v1031 = vadd.f32 0.0, %v1030
        %1032 = vmatmul.bf16.gmra.mxu0 %v214
        %v1033 = vpop.f32.mrf.mxu0
        %v1034 = vadd.f32 0.0, %v1033
        %v1035 = vpop.f32.mrf.mxu0
        %v1036 = vadd.f32 0.0, %v1035
        %1037 = vmatmul.bf16.gmra.mxu0 %v217
        %v1038 = vpop.f32.mrf.mxu0
        %v1039 = vadd.f32 0.0, %v1038
        %v1040 = vpop.f32.mrf.mxu0
        %v1041 = vadd.f32 0.0, %v1040
        %1042 = vdwg.mxu0
        %1043 = vmatpush.bf16.msra.mxu0 %v603
        %1044 = vmatpush.bf16.msra.mxu0 %v600
        %1045 = vmatpush.bf16.msra.mxu0 %v597
        %1046 = vmatpush.bf16.msra.mxu0 %v594
        %1047 = vmatpush.bf16.msra.mxu0 %v591
        %1048 = vmatpush.bf16.msra.mxu0 %v588
        %1049 = vmatpush.bf16.msra.mxu0 %v585
        %1050 = vmatpush.bf16.msra.mxu0 %v582
        %1051 = vmatmul.bf16.gmra.mxu0 %v197
        %v1052 = vpop.f32.mrf.mxu0
        %v1053 = vadd.f32 %v1004, %v1052
        %v1054 = vpop.f32.mrf.mxu0
        %v1055 = vadd.f32 %v1006, %v1054
        %1056 = vmatmul.bf16.gmra.mxu0 %v200
        %v1057 = vpop.f32.mrf.mxu0
        %v1058 = vadd.f32 %v1009, %v1057
        %v1059 = vpop.f32.mrf.mxu0
        %v1060 = vadd.f32 %v1011, %v1059
        %1061 = vmatmul.bf16.gmra.mxu0 %v203
        %v1062 = vpop.f32.mrf.mxu0
        %v1063 = vadd.f32 %v1014, %v1062
        %v1064 = vpop.f32.mrf.mxu0
        %v1065 = vadd.f32 %v1016, %v1064
        %1066 = vmatmul.bf16.gmra.mxu0 %v206
        %v1067 = vpop.f32.mrf.mxu0
        %v1068 = vadd.f32 %v1019, %v1067
        %v1069 = vpop.f32.mrf.mxu0
        %v1070 = vadd.f32 %v1021, %v1069
        %1071 = vmatmul.bf16.gmra.mxu0 %v209
        %v1072 = vpop.f32.mrf.mxu0
        %v1073 = vadd.f32 %v1024, %v1072
        %v1074 = vpop.f32.mrf.mxu0
        %v1075 = vadd.f32 %v1026, %v1074
        %1076 = vmatmul.bf16.gmra.mxu0 %v212
        %v1077 = vpop.f32.mrf.mxu0
        %v1078 = vadd.f32 %v1029, %v1077
        %v1079 = vpop.f32.mrf.mxu0
        %v1080 = vadd.f32 %v1031, %v1079
        %1081 = vmatmul.bf16.gmra.mxu0 %v215
        %v1082 = vpop.f32.mrf.mxu0
        %v1083 = vadd.f32 %v1034, %v1082
        %v1084 = vpop.f32.mrf.mxu0
        %v1085 = vadd.f32 %v1036, %v1084
        %1086 = vmatmul.bf16.gmra.mxu0 %v218
        %v1087 = vpop.f32.mrf.mxu0
        %v1088 = vadd.f32 %v1039, %v1087
        %v1089 = vpop.f32.mrf.mxu0
        %v1090 = vadd.f32 %v1041, %v1089
        %1091 = vdwg.mxu0
        %1092 = vmatpush.bf16.msra.mxu0 %v627
        %1093 = vmatpush.bf16.msra.mxu0 %v624
        %1094 = vmatpush.bf16.msra.mxu0 %v621
        %1095 = vmatpush.bf16.msra.mxu0 %v618
        %1096 = vmatpush.bf16.msra.mxu0 %v615
        %1097 = vmatpush.bf16.msra.mxu0 %v612
        %1098 = vmatpush.bf16.msra.mxu0 %v609
        %1099 = vmatpush.bf16.msra.mxu0 %v606
        %1100 = vmatmul.bf16.gmra.mxu0 %v198
        %v1101 = vpop.f32.mrf.mxu0
        %v1102 = vadd.f32 %v1053, %v1101
        %v1103 = vpop.f32.mrf.mxu0
        %v1104 = vadd.f32 %v1055, %v1103
        %1105 = vmatmul.bf16.gmra.mxu0 %v201
        %v1106 = vpop.f32.mrf.mxu0
        %v1107 = vadd.f32 %v1058, %v1106
        %v1108 = vpop.f32.mrf.mxu0
        %v1109 = vadd.f32 %v1060, %v1108
        %1110 = vmatmul.bf16.gmra.mxu0 %v204
        %v1111 = vpop.f32.mrf.mxu0
        %v1112 = vadd.f32 %v1063, %v1111
        %v1113 = vpop.f32.mrf.mxu0
        %v1114 = vadd.f32 %v1065, %v1113
        %1115 = vmatmul.bf16.gmra.mxu0 %v207
        %v1116 = vpop.f32.mrf.mxu0
        %v1117 = vadd.f32 %v1068, %v1116
        %v1118 = vpop.f32.mrf.mxu0
        %v1119 = vadd.f32 %v1070, %v1118
        %1120 = vmatmul.bf16.gmra.mxu0 %v210
        %v1121 = vpop.f32.mrf.mxu0
        %v1122 = vadd.f32 %v1073, %v1121
        %v1123 = vpop.f32.mrf.mxu0
        %v1124 = vadd.f32 %v1075, %v1123
        %1125 = vmatmul.bf16.gmra.mxu0 %v213
        %v1126 = vpop.f32.mrf.mxu0
        %v1127 = vadd.f32 %v1078, %v1126
        %v1128 = vpop.f32.mrf.mxu0
        %v1129 = vadd.f32 %v1080, %v1128
        %1130 = vmatmul.bf16.gmra.mxu0 %v216
        %v1131 = vpop.f32.mrf.mxu0
        %v1132 = vadd.f32 %v1083, %v1131
        %v1133 = vpop.f32.mrf.mxu0
        %v1134 = vadd.f32 %v1085, %v1133
        %1135 = vmatmul.bf16.gmra.mxu0 %v219
        %v1136 = vpop.f32.mrf.mxu0
        %v1137 = vadd.f32 %v1088, %v1136
        %v1138 = vpop.f32.mrf.mxu0
        %v1139 = vadd.f32 %v1090, %v1138
        %1140 = vdwg.mxu0
        %v1141 = vpack.c.bf16 %v808, %v808
        %v1142 = vpack.c.bf16 %v810, %v810
        %v1143 = vpack.c.bf16 %v813, %v813
        %v1144 = vpack.c.bf16 %v815, %v815
        %v1145 = vpack.c.bf16 %v818, %v818
        %v1146 = vpack.c.bf16 %v820, %v820
        %v1147 = vpack.c.bf16 %v823, %v823
        %v1148 = vpack.c.bf16 %v825, %v825
        %v1149 = vpack.c.bf16 %v828, %v828
        %v1150 = vpack.c.bf16 %v830, %v830
        %v1151 = vpack.c.bf16 %v833, %v833
        %v1152 = vpack.c.bf16 %v835, %v835
        %v1153 = vpack.c.bf16 %v838, %v838
        %v1154 = vpack.c.bf16 %v840, %v840
        %v1155 = vpack.c.bf16 %v843, %v843
        %v1156 = vpack.c.bf16 %v845, %v845
        %v1157 = vpack.c.bf16 %v955, %v955
        %v1158 = vpack.c.bf16 %v957, %v957
        %v1159 = vpack.c.bf16 %v960, %v960
        %v1160 = vpack.c.bf16 %v962, %v962
        %v1161 = vpack.c.bf16 %v965, %v965
        %v1162 = vpack.c.bf16 %v967, %v967
        %v1163 = vpack.c.bf16 %v970, %v970
        %v1164 = vpack.c.bf16 %v972, %v972
        %v1165 = vpack.c.bf16 %v975, %v975
        %v1166 = vpack.c.bf16 %v977, %v977
        %v1167 = vpack.c.bf16 %v980, %v980
        %v1168 = vpack.c.bf16 %v982, %v982
        %v1169 = vpack.c.bf16 %v985, %v985
        %v1170 = vpack.c.bf16 %v987, %v987
        %v1171 = vpack.c.bf16 %v990, %v990
        %v1172 = vpack.c.bf16 %v992, %v992
        %v1173 = vpack.c.bf16 %v1102, %v1102
        %v1174 = vpack.c.bf16 %v1104, %v1104
        %v1175 = vpack.c.bf16 %v1107, %v1107
        %v1176 = vpack.c.bf16 %v1109, %v1109
        %v1177 = vpack.c.bf16 %v1112, %v1112
        %v1178 = vpack.c.bf16 %v1114, %v1114
        %v1179 = vpack.c.bf16 %v1117, %v1117
        %v1180 = vpack.c.bf16 %v1119, %v1119
        %v1181 = vpack.c.bf16 %v1122, %v1122
        %v1182 = vpack.c.bf16 %v1124, %v1124
        %v1183 = vpack.c.bf16 %v1127, %v1127
        %v1184 = vpack.c.bf16 %v1129, %v1129
        %v1185 = vpack.c.bf16 %v1132, %v1132
        %v1186 = vpack.c.bf16 %v1134, %v1134
        %v1187 = vpack.c.bf16 %v1137, %v1137
        %v1188 = vpack.c.bf16 %v1139, %v1139
        %v1189 = vlaneseq
        %v1190 = vshrl.u32 %v1189, 7
        %v1191 = vadd.s32 %v1190, 8
        %v1192 = vadd.s32 %v1190, 16
        %v1193 = vadd.s32 %v1190, 24
        %v1194 = vadd.s32 %v1190, 32
        %v1195 = vadd.s32 %v1190, 40
        %v1196 = vadd.s32 %v1190, 48
        %v1197 = vadd.s32 %v1190, 56
        %v1198 = vlaneseq
        %v1199 = vand.u32 %v1198, 127
        %vm1200 = vcmp.le.s32.totalorder %v1199, %v1190
        %vm1201 = vcmp.le.s32.totalorder %v1199, %v1191
        %vm1202 = vcmp.le.s32.totalorder %v1199, %v1192
        %vm1203 = vcmp.le.s32.totalorder %v1199, %v1193
        %vm1204 = vcmp.le.s32.totalorder %v1199, %v1194
        %vm1205 = vcmp.le.s32.totalorder %v1199, %v1195
        %vm1206 = vcmp.le.s32.totalorder %v1199, %v1196
        %vm1207 = vcmp.le.s32.totalorder %v1199, %v1197
        %v1208 = vsel %vm1200, 0.0, -inf
        %v1209 = vsel %vm1201, 0.0, -inf
        %v1210 = vsel %vm1202, 0.0, -inf
        %v1211 = vsel %vm1203, 0.0, -inf
        %v1212 = vsel %vm1204, 0.0, -inf
        %v1213 = vsel %vm1205, 0.0, -inf
        %v1214 = vsel %vm1206, 0.0, -inf
        %v1215 = vsel %vm1207, 0.0, -inf
        %v1224 = vunpack.c.l.b16 %v1141
        %v1225 = vunpack.c.l.b16 %v1142
        %v1226 = vunpack.c.l.b16 %v1143
        %v1227 = vunpack.c.l.b16 %v1144
        %v1228 = vunpack.c.l.b16 %v1145
        %v1229 = vunpack.c.l.b16 %v1146
        %v1230 = vunpack.c.l.b16 %v1147
        %v1231 = vunpack.c.l.b16 %v1148
        %v1232 = vpack.c.b16 %v1225, %v1224
        %v1233 = vpack.c.b16 %v1227, %v1226
        %v1234 = vpack.c.b16 %v1229, %v1228
        %v1235 = vpack.c.b16 %v1231, %v1230
        %v1248 = vunpack.c.l.b16 %v1157
        %v1249 = vunpack.c.l.b16 %v1158
        %v1250 = vunpack.c.l.b16 %v1159
        %v1251 = vunpack.c.l.b16 %v1160
        %v1252 = vunpack.c.l.b16 %v1161
        %v1253 = vunpack.c.l.b16 %v1162
        %v1254 = vunpack.c.l.b16 %v1163
        %v1255 = vunpack.c.l.b16 %v1164
        %v1256 = vpack.c.b16 %v1249, %v1248
        %v1257 = vpack.c.b16 %v1251, %v1250
        %v1258 = vpack.c.b16 %v1253, %v1252
        %v1259 = vpack.c.b16 %v1255, %v1254
        %1264 = vmatpush.bf16.xpose.msra.mxu0 0
        %1265 = vmatpush.bf16.xpose.msra.mxu0 0
        %1266 = vmatpush.bf16.xpose.msra.mxu0 0
        %1267 = vmatpush.bf16.xpose.msra.mxu0 0
        %1268 = vmatpush.bf16.xpose.msra.mxu0 %v1259
        %1269 = vmatpush.bf16.xpose.msra.mxu0 %v1258
        %1270 = vmatpush.bf16.xpose.msra.mxu0 %v1257
        %1271 = vmatpush.bf16.xpose.msra.mxu0 %v1256
        %1272 = vmatmul.bf16.gmra.mxu0 %v1232
        %v1273 = vpop.f32.mrf.mxu0
        %v1274 = vadd.f32 %v1208, %v1273
        %v1275 = vpop.f32.mrf.mxu0
        %v1276 = vadd.f32 %v1209, %v1275
        %1277 = vmatmul.bf16.gmra.mxu0 %v1233
        %v1278 = vpop.f32.mrf.mxu0
        %v1279 = vadd.f32 %v1210, %v1278
        %v1280 = vpop.f32.mrf.mxu0
        %v1281 = vadd.f32 %v1211, %v1280
        %1282 = vmatmul.bf16.gmra.mxu0 %v1234
        %v1283 = vpop.f32.mrf.mxu0
        %v1284 = vadd.f32 %v1212, %v1283
        %v1285 = vpop.f32.mrf.mxu0
        %v1286 = vadd.f32 %v1213, %v1285
        %1287 = vmatmul.bf16.gmra.mxu0 %v1235
        %v1288 = vpop.f32.mrf.mxu0
        %v1289 = vadd.f32 %v1214, %v1288
        %v1290 = vpop.f32.mrf.mxu0
        %v1291 = vadd.f32 %v1215, %v1290
        %1292 = vdwg.mxu0
        %v1301 = vunpack.c.l.b16 %v1149
        %v1302 = vunpack.c.l.b16 %v1150
        %v1303 = vunpack.c.l.b16 %v1151
        %v1304 = vunpack.c.l.b16 %v1152
        %v1305 = vunpack.c.l.b16 %v1153
        %v1306 = vunpack.c.l.b16 %v1154
        %v1307 = vunpack.c.l.b16 %v1155
        %v1308 = vunpack.c.l.b16 %v1156
        %v1309 = vpack.c.b16 %v1302, %v1301
        %v1310 = vpack.c.b16 %v1304, %v1303
        %v1311 = vpack.c.b16 %v1306, %v1305
        %v1312 = vpack.c.b16 %v1308, %v1307
        %v1325 = vunpack.c.l.b16 %v1165
        %v1326 = vunpack.c.l.b16 %v1166
        %v1327 = vunpack.c.l.b16 %v1167
        %v1328 = vunpack.c.l.b16 %v1168
        %v1329 = vunpack.c.l.b16 %v1169
        %v1330 = vunpack.c.l.b16 %v1170
        %v1331 = vunpack.c.l.b16 %v1171
        %v1332 = vunpack.c.l.b16 %v1172
        %v1333 = vpack.c.b16 %v1326, %v1325
        %v1334 = vpack.c.b16 %v1328, %v1327
        %v1335 = vpack.c.b16 %v1330, %v1329
        %v1336 = vpack.c.b16 %v1332, %v1331
        %1341 = vmatpush.bf16.xpose.msra.mxu0 0
        %1342 = vmatpush.bf16.xpose.msra.mxu0 0
        %1343 = vmatpush.bf16.xpose.msra.mxu0 0
        %1344 = vmatpush.bf16.xpose.msra.mxu0 0
        %1345 = vmatpush.bf16.xpose.msra.mxu0 %v1336
        %1346 = vmatpush.bf16.xpose.msra.mxu0 %v1335
        %1347 = vmatpush.bf16.xpose.msra.mxu0 %v1334
        %1348 = vmatpush.bf16.xpose.msra.mxu0 %v1333
        %1349 = vmatmul.bf16.gmra.mxu0 %v1309
        %v1350 = vpop.f32.mrf.mxu0
        %v1351 = vadd.f32 %v1208, %v1350
        %v1352 = vpop.f32.mrf.mxu0
        %v1353 = vadd.f32 %v1209, %v1352
        %1354 = vmatmul.bf16.gmra.mxu0 %v1310
        %v1355 = vpop.f32.mrf.mxu0
        %v1356 = vadd.f32 %v1210, %v1355
        %v1357 = vpop.f32.mrf.mxu0
        %v1358 = vadd.f32 %v1211, %v1357
        %1359 = vmatmul.bf16.gmra.mxu0 %v1311
        %v1360 = vpop.f32.mrf.mxu0
        %v1361 = vadd.f32 %v1212, %v1360
        %v1362 = vpop.f32.mrf.mxu0
        %v1363 = vadd.f32 %v1213, %v1362
        %1364 = vmatmul.bf16.gmra.mxu0 %v1312
        %v1365 = vpop.f32.mrf.mxu0
        %v1366 = vadd.f32 %v1214, %v1365
        %v1367 = vpop.f32.mrf.mxu0
        %v1368 = vadd.f32 %v1215, %v1367
        %1369 = vdwg.mxu0
        %vm1370 = vcmask 523264
        %v1371 = vsel %vm1370, %v1274, -inf
        %1372 = vmax.xlane.f32.xlu0 %v1371
        %v1373 = vpop.xlane.xlu0 %1372
        %v1374 = vsel %vm1370, %v1276, -inf
        %1375 = vmax.xlane.f32.xlu0 %v1374
        %v1376 = vpop.xlane.xlu0 %1375
        %v1377 = vsel %vm1370, %v1279, -inf
        %1378 = vmax.xlane.f32.xlu0 %v1377
        %v1379 = vpop.xlane.xlu0 %1378
        %v1380 = vsel %vm1370, %v1281, -inf
        %1381 = vmax.xlane.f32.xlu0 %v1380
        %v1382 = vpop.xlane.xlu0 %1381
        %v1383 = vsel %vm1370, %v1284, -inf
        %1384 = vmax.xlane.f32.xlu0 %v1383
        %v1385 = vpop.xlane.xlu0 %1384
        %v1386 = vsel %vm1370, %v1286, -inf
        %1387 = vmax.xlane.f32.xlu0 %v1386
        %v1388 = vpop.xlane.xlu0 %1387
        %v1389 = vsel %vm1370, %v1289, -inf
        %1390 = vmax.xlane.f32.xlu0 %v1389
        %v1391 = vpop.xlane.xlu0 %1390
        %v1392 = vsel %vm1370, %v1291, -inf
        %1393 = vmax.xlane.f32.xlu0 %v1392
        %v1394 = vpop.xlane.xlu0 %1393
        %v1395 = vsel %vm1370, %v1351, -inf
        %1396 = vmax.xlane.f32.xlu0 %v1395
        %v1397 = vpop.xlane.xlu0 %1396
        %v1398 = vsel %vm1370, %v1353, -inf
        %1399 = vmax.xlane.f32.xlu0 %v1398
        %v1400 = vpop.xlane.xlu0 %1399
        %v1401 = vsel %vm1370, %v1356, -inf
        %1402 = vmax.xlane.f32.xlu0 %v1401
        %v1403 = vpop.xlane.xlu0 %1402
        %v1404 = vsel %vm1370, %v1358, -inf
        %1405 = vmax.xlane.f32.xlu0 %v1404
        %v1406 = vpop.xlane.xlu0 %1405
        %v1407 = vsel %vm1370, %v1361, -inf
        %1408 = vmax.xlane.f32.xlu0 %v1407
        %v1409 = vpop.xlane.xlu0 %1408
        %v1410 = vsel %vm1370, %v1363, -inf
        %1411 = vmax.xlane.f32.xlu0 %v1410
        %v1412 = vpop.xlane.xlu0 %1411
        %v1413 = vsel %vm1370, %v1366, -inf
        %1414 = vmax.xlane.f32.xlu0 %v1413
        %v1415 = vpop.xlane.xlu0 %1414
        %v1416 = vsel %vm1370, %v1368, -inf
        %1417 = vmax.xlane.f32.xlu0 %v1416
        %v1418 = vpop.xlane.xlu0 %1417
        %v1419 = vsub.f32 %v1274, %v1373
        %v1420 = vsub.f32 %v1276, %v1376
        %v1421 = vsub.f32 %v1279, %v1379
        %v1422 = vsub.f32 %v1281, %v1382
        %v1423 = vsub.f32 %v1284, %v1385
        %v1424 = vsub.f32 %v1286, %v1388
        %v1425 = vsub.f32 %v1289, %v1391
        %v1426 = vsub.f32 %v1291, %v1394
        %v1427 = vsub.f32 %v1351, %v1397
        %v1428 = vsub.f32 %v1353, %v1400
        %v1429 = vsub.f32 %v1356, %v1403
        %v1430 = vsub.f32 %v1358, %v1406
        %v1431 = vsub.f32 %v1361, %v1409
        %v1432 = vsub.f32 %v1363, %v1412
        %v1433 = vsub.f32 %v1366, %v1415
        %v1434 = vsub.f32 %v1368, %v1418
        %v1435 = vmul.f32 %v1419, 1.442695
        %v1436 = vpow.pop %v1435
        %v1437 = vmul.f32 %v1420, 1.442695
        %v1438 = vpow.pop %v1437
        %v1439 = vmul.f32 %v1421, 1.442695
        %v1440 = vpow.pop %v1439
        %v1441 = vmul.f32 %v1422, 1.442695
        %v1442 = vpow.pop %v1441
        %v1443 = vmul.f32 %v1423, 1.442695
        %v1444 = vpow.pop %v1443
        %v1445 = vmul.f32 %v1424, 1.442695
        %v1446 = vpow.pop %v1445
        %v1447 = vmul.f32 %v1425, 1.442695
        %v1448 = vpow.pop %v1447
        %v1449 = vmul.f32 %v1426, 1.442695
        %v1450 = vpow.pop %v1449
        %v1451 = vmul.f32 %v1427, 1.442695
        %v1452 = vpow.pop %v1451
        %v1453 = vmul.f32 %v1428, 1.442695
        %v1454 = vpow.pop %v1453
        %v1455 = vmul.f32 %v1429, 1.442695
        %v1456 = vpow.pop %v1455
        %v1457 = vmul.f32 %v1430, 1.442695
        %v1458 = vpow.pop %v1457
        %v1459 = vmul.f32 %v1431, 1.442695
        %v1460 = vpow.pop %v1459
        %v1461 = vmul.f32 %v1432, 1.442695
        %v1462 = vpow.pop %v1461
        %v1463 = vmul.f32 %v1433, 1.442695
        %v1464 = vpow.pop %v1463
        %v1465 = vmul.f32 %v1434, 1.442695
        %v1466 = vpow.pop %v1465
        %v1467 = vsel %vm1370, %v1436, 0.0
        %1468 = vadd.xlane.f32.xlu0 %v1467
        %v1469 = vpop.xlane.xlu0 %1468
        %v1470 = vsel %vm1370, %v1438, 0.0
        %1471 = vadd.xlane.f32.xlu0 %v1470
        %v1472 = vpop.xlane.xlu0 %1471
        %v1473 = vsel %vm1370, %v1440, 0.0
        %1474 = vadd.xlane.f32.xlu0 %v1473
        %v1475 = vpop.xlane.xlu0 %1474
        %v1476 = vsel %vm1370, %v1442, 0.0
        %1477 = vadd.xlane.f32.xlu0 %v1476
        %v1478 = vpop.xlane.xlu0 %1477
        %v1479 = vsel %vm1370, %v1444, 0.0
        %1480 = vadd.xlane.f32.xlu0 %v1479
        %v1481 = vpop.xlane.xlu0 %1480
        %v1482 = vsel %vm1370, %v1446, 0.0
        %1483 = vadd.xlane.f32.xlu0 %v1482
        %v1484 = vpop.xlane.xlu0 %1483
        %v1485 = vsel %vm1370, %v1448, 0.0
        %1486 = vadd.xlane.f32.xlu0 %v1485
        %v1487 = vpop.xlane.xlu0 %1486
        %v1488 = vsel %vm1370, %v1450, 0.0
        %1489 = vadd.xlane.f32.xlu0 %v1488
        %v1490 = vpop.xlane.xlu0 %1489
        %v1491 = vsel %vm1370, %v1452, 0.0
        %1492 = vadd.xlane.f32.xlu0 %v1491
        %v1493 = vpop.xlane.xlu0 %1492
        %v1494 = vsel %vm1370, %v1454, 0.0
        %1495 = vadd.xlane.f32.xlu0 %v1494
        %v1496 = vpop.xlane.xlu0 %1495
        %v1497 = vsel %vm1370, %v1456, 0.0
        %1498 = vadd.xlane.f32.xlu0 %v1497
        %v1499 = vpop.xlane.xlu0 %1498
        %v1500 = vsel %vm1370, %v1458, 0.0
        %1501 = vadd.xlane.f32.xlu0 %v1500
        %v1502 = vpop.xlane.xlu0 %1501
        %v1503 = vsel %vm1370, %v1460, 0.0
        %1504 = vadd.xlane.f32.xlu0 %v1503
        %v1505 = vpop.xlane.xlu0 %1504
        %v1506 = vsel %vm1370, %v1462, 0.0
        %1507 = vadd.xlane.f32.xlu0 %v1506
        %v1508 = vpop.xlane.xlu0 %1507
        %v1509 = vsel %vm1370, %v1464, 0.0
        %1510 = vadd.xlane.f32.xlu0 %v1509
        %v1511 = vpop.xlane.xlu0 %1510
        %v1512 = vsel %vm1370, %v1466, 0.0
        %1513 = vadd.xlane.f32.xlu0 %v1512
        %v1514 = vpop.xlane.xlu0 %1513
        %v1515 = vrcp.pop %v1469
        %v1516 = vrcp.pop %v1472
        %v1517 = vrcp.pop %v1475
        %v1518 = vrcp.pop %v1478
        %v1519 = vrcp.pop %v1481
        %v1520 = vrcp.pop %v1484
        %v1521 = vrcp.pop %v1487
        %v1522 = vrcp.pop %v1490
        %v1523 = vrcp.pop %v1493
        %v1524 = vrcp.pop %v1496
        %v1525 = vrcp.pop %v1499
        %v1526 = vrcp.pop %v1502
        %v1527 = vrcp.pop %v1505
        %v1528 = vrcp.pop %v1508
        %v1529 = vrcp.pop %v1511
        %v1530 = vrcp.pop %v1514
        %v1531 = vmul.f32 %v1436, %v1515
        %v1532 = vmul.f32 %v1438, %v1516
        %v1533 = vmul.f32 %v1440, %v1517
        %v1534 = vmul.f32 %v1442, %v1518
        %v1535 = vmul.f32 %v1444, %v1519
        %v1536 = vmul.f32 %v1446, %v1520
        %v1537 = vmul.f32 %v1448, %v1521
        %v1538 = vmul.f32 %v1450, %v1522
        %v1539 = vmul.f32 %v1452, %v1523
        %v1540 = vmul.f32 %v1454, %v1524
        %v1541 = vmul.f32 %v1456, %v1525
        %v1542 = vmul.f32 %v1458, %v1526
        %v1543 = vmul.f32 %v1460, %v1527
        %v1544 = vmul.f32 %v1462, %v1528
        %v1545 = vmul.f32 %v1464, %v1529
        %v1546 = vmul.f32 %v1466, %v1530
        %v1547 = vpack.c.bf16 %v1531, %v1531
        %v1548 = vpack.c.bf16 %v1532, %v1532
        %v1549 = vpack.c.bf16 %v1533, %v1533
        %v1550 = vpack.c.bf16 %v1534, %v1534
        %v1551 = vpack.c.bf16 %v1535, %v1535
        %v1552 = vpack.c.bf16 %v1536, %v1536
        %v1553 = vpack.c.bf16 %v1537, %v1537
        %v1554 = vpack.c.bf16 %v1538, %v1538
        %v1555 = vpack.c.bf16 %v1539, %v1539
        %v1556 = vpack.c.bf16 %v1540, %v1540
        %v1557 = vpack.c.bf16 %v1541, %v1541
        %v1558 = vpack.c.bf16 %v1542, %v1542
        %v1559 = vpack.c.bf16 %v1543, %v1543
        %v1560 = vpack.c.bf16 %v1544, %v1544
        %v1561 = vpack.c.bf16 %v1545, %v1545
        %v1562 = vpack.c.bf16 %v1546, %v1546
        %v1571 = vunpack.c.l.b16 %v1547
        %v1572 = vunpack.c.l.b16 %v1548
        %v1573 = vunpack.c.l.b16 %v1549
        %v1574 = vunpack.c.l.b16 %v1550
        %v1575 = vunpack.c.l.b16 %v1551
        %v1576 = vunpack.c.l.b16 %v1552
        %v1577 = vunpack.c.l.b16 %v1553
        %v1578 = vunpack.c.l.b16 %v1554
        %v1579 = vpack.c.b16 %v1572, %v1571
        %v1580 = vpack.c.b16 %v1574, %v1573
        %v1581 = vpack.c.b16 %v1576, %v1575
        %v1582 = vpack.c.b16 %v1578, %v1577
        %v1591 = vunpack.c.l.b16 %v1173
        %v1592 = vunpack.c.l.b16 %v1174
        %v1593 = vunpack.c.l.b16 %v1175
        %v1594 = vunpack.c.l.b16 %v1176
        %v1595 = vunpack.c.l.b16 %v1177
        %v1596 = vunpack.c.l.b16 %v1178
        %v1597 = vunpack.c.l.b16 %v1179
        %v1598 = vunpack.c.l.b16 %v1180
        %v1599 = vpack.c.b16 %v1592, %v1591
        %v1600 = vpack.c.b16 %v1594, %v1593
        %v1601 = vpack.c.b16 %v1596, %v1595
        %v1602 = vpack.c.b16 %v1598, %v1597
        %v1608 = vsel %vm1370, %v1579, 0
        %v1611 = vsel %vm1370, %v1580, 0
        %v1614 = vsel %vm1370, %v1581, 0
        %v1617 = vsel %vm1370, %v1582, 0
        %1619 = vmatpush.bf16.msra.mxu0 0
        %1620 = vmatpush.bf16.msra.mxu0 0
        %1621 = vmatpush.bf16.msra.mxu0 0
        %1622 = vmatpush.bf16.msra.mxu0 0
        %1623 = vmatpush.bf16.msra.mxu0 %v1602
        %1624 = vmatpush.bf16.msra.mxu0 %v1601
        %1625 = vmatpush.bf16.msra.mxu0 %v1600
        %1626 = vmatpush.bf16.msra.mxu0 %v1599
        %1627 = vmatmul.bf16.gmra.mxu0 %v1608
        %v1628 = vpop.f32.mrf.mxu0
        %v1629 = vadd.f32 0.0, %v1628
        %v1630 = vpop.f32.mrf.mxu0
        %v1631 = vadd.f32 0.0, %v1630
        %1632 = vmatmul.bf16.gmra.mxu0 %v1611
        %v1633 = vpop.f32.mrf.mxu0
        %v1634 = vadd.f32 0.0, %v1633
        %v1635 = vpop.f32.mrf.mxu0
        %v1636 = vadd.f32 0.0, %v1635
        %1637 = vmatmul.bf16.gmra.mxu0 %v1614
        %v1638 = vpop.f32.mrf.mxu0
        %v1639 = vadd.f32 0.0, %v1638
        %v1640 = vpop.f32.mrf.mxu0
        %v1641 = vadd.f32 0.0, %v1640
        %1642 = vmatmul.bf16.gmra.mxu0 %v1617
        %v1643 = vpop.f32.mrf.mxu0
        %v1644 = vadd.f32 0.0, %v1643
        %v1645 = vpop.f32.mrf.mxu0
        %v1646 = vadd.f32 0.0, %v1645
        %1647 = vdwg.mxu0
        %v1656 = vunpack.c.l.b16 %v1555
        %v1657 = vunpack.c.l.b16 %v1556
        %v1658 = vunpack.c.l.b16 %v1557
        %v1659 = vunpack.c.l.b16 %v1558
        %v1660 = vunpack.c.l.b16 %v1559
        %v1661 = vunpack.c.l.b16 %v1560
        %v1662 = vunpack.c.l.b16 %v1561
        %v1663 = vunpack.c.l.b16 %v1562
        %v1664 = vpack.c.b16 %v1657, %v1656
        %v1665 = vpack.c.b16 %v1659, %v1658
        %v1666 = vpack.c.b16 %v1661, %v1660
        %v1667 = vpack.c.b16 %v1663, %v1662
        %v1676 = vunpack.c.l.b16 %v1181
        %v1677 = vunpack.c.l.b16 %v1182
        %v1678 = vunpack.c.l.b16 %v1183
        %v1679 = vunpack.c.l.b16 %v1184
        %v1680 = vunpack.c.l.b16 %v1185
        %v1681 = vunpack.c.l.b16 %v1186
        %v1682 = vunpack.c.l.b16 %v1187
        %v1683 = vunpack.c.l.b16 %v1188
        %v1684 = vpack.c.b16 %v1677, %v1676
        %v1685 = vpack.c.b16 %v1679, %v1678
        %v1686 = vpack.c.b16 %v1681, %v1680
        %v1687 = vpack.c.b16 %v1683, %v1682
        %v1693 = vsel %vm1370, %v1664, 0
        %v1696 = vsel %vm1370, %v1665, 0
        %v1699 = vsel %vm1370, %v1666, 0
        %v1702 = vsel %vm1370, %v1667, 0
        %1704 = vmatpush.bf16.msra.mxu0 0
        %1705 = vmatpush.bf16.msra.mxu0 0
        %1706 = vmatpush.bf16.msra.mxu0 0
        %1707 = vmatpush.bf16.msra.mxu0 0
        %1708 = vmatpush.bf16.msra.mxu0 %v1687
        %1709 = vmatpush.bf16.msra.mxu0 %v1686
        %1710 = vmatpush.bf16.msra.mxu0 %v1685
        %1711 = vmatpush.bf16.msra.mxu0 %v1684
        %1712 = vmatmul.bf16.gmra.mxu0 %v1693
        %v1713 = vpop.f32.mrf.mxu0
        %v1714 = vadd.f32 0.0, %v1713
        %v1715 = vpop.f32.mrf.mxu0
        %v1716 = vadd.f32 0.0, %v1715
        %1717 = vmatmul.bf16.gmra.mxu0 %v1696
        %v1718 = vpop.f32.mrf.mxu0
        %v1719 = vadd.f32 0.0, %v1718
        %v1720 = vpop.f32.mrf.mxu0
        %v1721 = vadd.f32 0.0, %v1720
        %1722 = vmatmul.bf16.gmra.mxu0 %v1699
        %v1723 = vpop.f32.mrf.mxu0
        %v1724 = vadd.f32 0.0, %v1723
        %v1725 = vpop.f32.mrf.mxu0
        %v1726 = vadd.f32 0.0, %v1725
        %1727 = vmatmul.bf16.gmra.mxu0 %v1702
        %v1728 = vpop.f32.mrf.mxu0
        %v1729 = vadd.f32 0.0, %v1728
        %v1730 = vpop.f32.mrf.mxu0
        %v1731 = vadd.f32 0.0, %v1730
        %1732 = vdwg.mxu0
        %v1733 = vrot.slane %v1629, 4
        %vm1734 = vcmask 1047556
        %v1735 = vsel %vm1734, 0.0, %v1733
        %v1737 = vunpack.c.l.s4 1983009808
        %v1738 = vunpack.c.0.s8 %v1737
        %v1739 = vperm.slane %v1629, %v1738
        %v1741 = vunpack.c.l.s4 1983009808
        %v1742 = vunpack.c.0.s8 %v1741
        %v1743 = vperm.slane %v1735, %v1742
        %v1744 = vrot.slane %v1714, 4
        %v1745 = vsel %vm1734, 0.0, %v1744
        %v1747 = vunpack.c.l.s4 1983009808
        %v1748 = vunpack.c.0.s8 %v1747
        %v1749 = vperm.slane %v1714, %v1748
        %v1751 = vunpack.c.l.s4 1983009808
        %v1752 = vunpack.c.0.s8 %v1751
        %v1753 = vperm.slane %v1745, %v1752
        %v1754 = vrot.slane %v1749, 4
        %v1755 = vsel %vm1734, %v1754, %v1739
        %v1756 = vrot.slane %v1739, 4
        %v1757 = vsel %vm1734, %v1749, %v1756
        %v1759 = vunpack.c.l.s4 1934713408
        %v1760 = vunpack.c.0.s8 %v1759
        %v1761 = vperm.slane %v1755, %v1760
        %v1763 = vunpack.c.l.s4 1934713408
        %v1764 = vunpack.c.0.s8 %v1763
        %v1765 = vperm.slane %v1757, %v1764
        %v1766 = vrot.slane %v1753, 4
        %v1767 = vsel %vm1734, %v1766, %v1743
        %v1768 = vrot.slane %v1743, 4
        %v1769 = vsel %vm1734, %v1753, %v1768
        %v1771 = vunpack.c.l.s4 1934713408
        %v1772 = vunpack.c.0.s8 %v1771
        %v1773 = vperm.slane %v1767, %v1772
        %v1775 = vunpack.c.l.s4 1934713408
        %v1776 = vunpack.c.0.s8 %v1775
        %v1777 = vperm.slane %v1769, %v1776
        %v1778 = vrot.slane %v1761, 4
        %v1779 = vsel %vm1734, 0.0, %v1778
        %v1780 = vrot.slane %v1765, 4
        %v1781 = vsel %vm1734, 0.0, %v1780
        %v1782 = vrot.slane %v1773, 4
        %v1783 = vsel %vm1734, 0.0, %v1782
        %v1784 = vrot.slane %v1777, 4
        %v1785 = vsel %vm1734, 0.0, %v1784
        %v1786 = vrot.slane %v1631, 4
        %v1787 = vsel %vm1734, 0.0, %v1786
        %v1789 = vunpack.c.l.s4 1983009808
        %v1790 = vunpack.c.0.s8 %v1789
        %v1791 = vperm.slane %v1631, %v1790
        %v1793 = vunpack.c.l.s4 1983009808
        %v1794 = vunpack.c.0.s8 %v1793
        %v1795 = vperm.slane %v1787, %v1794
        %v1796 = vrot.slane %v1716, 4
        %v1797 = vsel %vm1734, 0.0, %v1796
        %v1799 = vunpack.c.l.s4 1983009808
        %v1800 = vunpack.c.0.s8 %v1799
        %v1801 = vperm.slane %v1716, %v1800
        %v1803 = vunpack.c.l.s4 1983009808
        %v1804 = vunpack.c.0.s8 %v1803
        %v1805 = vperm.slane %v1797, %v1804
        %v1806 = vrot.slane %v1801, 4
        %v1807 = vsel %vm1734, %v1806, %v1791
        %v1808 = vrot.slane %v1791, 4
        %v1809 = vsel %vm1734, %v1801, %v1808
        %v1811 = vunpack.c.l.s4 1934713408
        %v1812 = vunpack.c.0.s8 %v1811
        %v1813 = vperm.slane %v1807, %v1812
        %v1815 = vunpack.c.l.s4 1934713408
        %v1816 = vunpack.c.0.s8 %v1815
        %v1817 = vperm.slane %v1809, %v1816
        %v1818 = vrot.slane %v1805, 4
        %v1819 = vsel %vm1734, %v1818, %v1795
        %v1820 = vrot.slane %v1795, 4
        %v1821 = vsel %vm1734, %v1805, %v1820
        %v1823 = vunpack.c.l.s4 1934713408
        %v1824 = vunpack.c.0.s8 %v1823
        %v1825 = vperm.slane %v1819, %v1824
        %v1827 = vunpack.c.l.s4 1934713408
        %v1828 = vunpack.c.0.s8 %v1827
        %v1829 = vperm.slane %v1821, %v1828
        %v1830 = vrot.slane %v1813, 4
        %v1831 = vsel %vm1734, 0.0, %v1830
        %v1832 = vrot.slane %v1817, 4
        %v1833 = vsel %vm1734, 0.0, %v1832
        %v1834 = vrot.slane %v1825, 4
        %v1835 = vsel %vm1734, 0.0, %v1834
        %v1836 = vrot.slane %v1829, 4
        %v1837 = vsel %vm1734, 0.0, %v1836
        %v1838 = vrot.slane %v1634, 4
        %v1839 = vsel %vm1734, 0.0, %v1838
        %v1841 = vunpack.c.l.s4 1983009808
        %v1842 = vunpack.c.0.s8 %v1841
        %v1843 = vperm.slane %v1634, %v1842
        %v1845 = vunpack.c.l.s4 1983009808
        %v1846 = vunpack.c.0.s8 %v1845
        %v1847 = vperm.slane %v1839, %v1846
        %v1848 = vrot.slane %v1719, 4
        %v1849 = vsel %vm1734, 0.0, %v1848
        %v1851 = vunpack.c.l.s4 1983009808
        %v1852 = vunpack.c.0.s8 %v1851
        %v1853 = vperm.slane %v1719, %v1852
        %v1855 = vunpack.c.l.s4 1983009808
        %v1856 = vunpack.c.0.s8 %v1855
        %v1857 = vperm.slane %v1849, %v1856
        %v1858 = vrot.slane %v1853, 4
        %v1859 = vsel %vm1734, %v1858, %v1843
        %v1860 = vrot.slane %v1843, 4
        %v1861 = vsel %vm1734, %v1853, %v1860
        %v1863 = vunpack.c.l.s4 1934713408
        %v1864 = vunpack.c.0.s8 %v1863
        %v1865 = vperm.slane %v1859, %v1864
        %v1867 = vunpack.c.l.s4 1934713408
        %v1868 = vunpack.c.0.s8 %v1867
        %v1869 = vperm.slane %v1861, %v1868
        %v1870 = vrot.slane %v1857, 4
        %v1871 = vsel %vm1734, %v1870, %v1847
        %v1872 = vrot.slane %v1847, 4
        %v1873 = vsel %vm1734, %v1857, %v1872
        %v1875 = vunpack.c.l.s4 1934713408
        %v1876 = vunpack.c.0.s8 %v1875
        %v1877 = vperm.slane %v1871, %v1876
        %v1879 = vunpack.c.l.s4 1934713408
        %v1880 = vunpack.c.0.s8 %v1879
        %v1881 = vperm.slane %v1873, %v1880
        %v1882 = vrot.slane %v1865, 4
        %v1883 = vsel %vm1734, 0.0, %v1882
        %v1884 = vrot.slane %v1869, 4
        %v1885 = vsel %vm1734, 0.0, %v1884
        %v1886 = vrot.slane %v1877, 4
        %v1887 = vsel %vm1734, 0.0, %v1886
        %v1888 = vrot.slane %v1881, 4
        %v1889 = vsel %vm1734, 0.0, %v1888
        %v1890 = vrot.slane %v1636, 4
        %v1891 = vsel %vm1734, 0.0, %v1890
        %v1893 = vunpack.c.l.s4 1983009808
        %v1894 = vunpack.c.0.s8 %v1893
        %v1895 = vperm.slane %v1636, %v1894
        %v1897 = vunpack.c.l.s4 1983009808
        %v1898 = vunpack.c.0.s8 %v1897
        %v1899 = vperm.slane %v1891, %v1898
        %v1900 = vrot.slane %v1721, 4
        %v1901 = vsel %vm1734, 0.0, %v1900
        %v1903 = vunpack.c.l.s4 1983009808
        %v1904 = vunpack.c.0.s8 %v1903
        %v1905 = vperm.slane %v1721, %v1904
        %v1907 = vunpack.c.l.s4 1983009808
        %v1908 = vunpack.c.0.s8 %v1907
        %v1909 = vperm.slane %v1901, %v1908
        %v1910 = vrot.slane %v1905, 4
        %v1911 = vsel %vm1734, %v1910, %v1895
        %v1912 = vrot.slane %v1895, 4
        %v1913 = vsel %vm1734, %v1905, %v1912
        %v1915 = vunpack.c.l.s4 1934713408
        %v1916 = vunpack.c.0.s8 %v1915
        %v1917 = vperm.slane %v1911, %v1916
        %v1919 = vunpack.c.l.s4 1934713408
        %v1920 = vunpack.c.0.s8 %v1919
        %v1921 = vperm.slane %v1913, %v1920
        %v1922 = vrot.slane %v1909, 4
        %v1923 = vsel %vm1734, %v1922, %v1899
        %v1924 = vrot.slane %v1899, 4
        %v1925 = vsel %vm1734, %v1909, %v1924
        %v1927 = vunpack.c.l.s4 1934713408
        %v1928 = vunpack.c.0.s8 %v1927
        %v1929 = vperm.slane %v1923, %v1928
        %v1931 = vunpack.c.l.s4 1934713408
        %v1932 = vunpack.c.0.s8 %v1931
        %v1933 = vperm.slane %v1925, %v1932
        %v1934 = vrot.slane %v1917, 4
        %v1935 = vsel %vm1734, 0.0, %v1934
        %v1936 = vrot.slane %v1921, 4
        %v1937 = vsel %vm1734, 0.0, %v1936
        %v1938 = vrot.slane %v1929, 4
        %v1939 = vsel %vm1734, 0.0, %v1938
        %v1940 = vrot.slane %v1933, 4
        %v1941 = vsel %vm1734, 0.0, %v1940
        %v1942 = vrot.slane %v1639, 4
        %v1943 = vsel %vm1734, 0.0, %v1942
        %v1945 = vunpack.c.l.s4 1983009808
        %v1946 = vunpack.c.0.s8 %v1945
        %v1947 = vperm.slane %v1639, %v1946
        %v1949 = vunpack.c.l.s4 1983009808
        %v1950 = vunpack.c.0.s8 %v1949
        %v1951 = vperm.slane %v1943, %v1950
        %v1952 = vrot.slane %v1724, 4
        %v1953 = vsel %vm1734, 0.0, %v1952
        %v1955 = vunpack.c.l.s4 1983009808
        %v1956 = vunpack.c.0.s8 %v1955
        %v1957 = vperm.slane %v1724, %v1956
        %v1959 = vunpack.c.l.s4 1983009808
        %v1960 = vunpack.c.0.s8 %v1959
        %v1961 = vperm.slane %v1953, %v1960
        %v1962 = vrot.slane %v1957, 4
        %v1963 = vsel %vm1734, %v1962, %v1947
        %v1964 = vrot.slane %v1947, 4
        %v1965 = vsel %vm1734, %v1957, %v1964
        %v1967 = vunpack.c.l.s4 1934713408
        %v1968 = vunpack.c.0.s8 %v1967
        %v1969 = vperm.slane %v1963, %v1968
        %v1971 = vunpack.c.l.s4 1934713408
        %v1972 = vunpack.c.0.s8 %v1971
        %v1973 = vperm.slane %v1965, %v1972
        %v1974 = vrot.slane %v1961, 4
        %v1975 = vsel %vm1734, %v1974, %v1951
        %v1976 = vrot.slane %v1951, 4
        %v1977 = vsel %vm1734, %v1961, %v1976
        %v1979 = vunpack.c.l.s4 1934713408
        %v1980 = vunpack.c.0.s8 %v1979
        %v1981 = vperm.slane %v1975, %v1980
        %v1983 = vunpack.c.l.s4 1934713408
        %v1984 = vunpack.c.0.s8 %v1983
        %v1985 = vperm.slane %v1977, %v1984
        %v1986 = vrot.slane %v1969, 4
        %v1987 = vsel %vm1734, 0.0, %v1986
        %v1988 = vrot.slane %v1973, 4
        %v1989 = vsel %vm1734, 0.0, %v1988
        %v1990 = vrot.slane %v1981, 4
        %v1991 = vsel %vm1734, 0.0, %v1990
        %v1992 = vrot.slane %v1985, 4
        %v1993 = vsel %vm1734, 0.0, %v1992
        %v1994 = vrot.slane %v1641, 4
        %v1995 = vsel %vm1734, 0.0, %v1994
        %v1997 = vunpack.c.l.s4 1983009808
        %v1998 = vunpack.c.0.s8 %v1997
        %v1999 = vperm.slane %v1641, %v1998
        %v2001 = vunpack.c.l.s4 1983009808
        %v2002 = vunpack.c.0.s8 %v2001
        %v2003 = vperm.slane %v1995, %v2002
        %v2004 = vrot.slane %v1726, 4
        %v2005 = vsel %vm1734, 0.0, %v2004
        %v2007 = vunpack.c.l.s4 1983009808
        %v2008 = vunpack.c.0.s8 %v2007
        %v2009 = vperm.slane %v1726, %v2008
        %v2011 = vunpack.c.l.s4 1983009808
        %v2012 = vunpack.c.0.s8 %v2011
        %v2013 = vperm.slane %v2005, %v2012
        %v2014 = vrot.slane %v2009, 4
        %v2015 = vsel %vm1734, %v2014, %v1999
        %v2016 = vrot.slane %v1999, 4
        %v2017 = vsel %vm1734, %v2009, %v2016
        %v2019 = vunpack.c.l.s4 1934713408
        %v2020 = vunpack.c.0.s8 %v2019
        %v2021 = vperm.slane %v2015, %v2020
        %v2023 = vunpack.c.l.s4 1934713408
        %v2024 = vunpack.c.0.s8 %v2023
        %v2025 = vperm.slane %v2017, %v2024
        %v2026 = vrot.slane %v2013, 4
        %v2027 = vsel %vm1734, %v2026, %v2003
        %v2028 = vrot.slane %v2003, 4
        %v2029 = vsel %vm1734, %v2013, %v2028
        %v2031 = vunpack.c.l.s4 1934713408
        %v2032 = vunpack.c.0.s8 %v2031
        %v2033 = vperm.slane %v2027, %v2032
        %v2035 = vunpack.c.l.s4 1934713408
        %v2036 = vunpack.c.0.s8 %v2035
        %v2037 = vperm.slane %v2029, %v2036
        %v2038 = vrot.slane %v2021, 4
        %v2039 = vsel %vm1734, 0.0, %v2038
        %v2040 = vrot.slane %v2025, 4
        %v2041 = vsel %vm1734, 0.0, %v2040
        %v2042 = vrot.slane %v2033, 4
        %v2043 = vsel %vm1734, 0.0, %v2042
        %v2044 = vrot.slane %v2037, 4
        %v2045 = vsel %vm1734, 0.0, %v2044
        %v2046 = vrot.slane %v1644, 4
        %v2047 = vsel %vm1734, 0.0, %v2046
        %v2049 = vunpack.c.l.s4 1983009808
        %v2050 = vunpack.c.0.s8 %v2049
        %v2051 = vperm.slane %v1644, %v2050
        %v2053 = vunpack.c.l.s4 1983009808
        %v2054 = vunpack.c.0.s8 %v2053
        %v2055 = vperm.slane %v2047, %v2054
        %v2056 = vrot.slane %v1729, 4
        %v2057 = vsel %vm1734, 0.0, %v2056
        %v2059 = vunpack.c.l.s4 1983009808
        %v2060 = vunpack.c.0.s8 %v2059
        %v2061 = vperm.slane %v1729, %v2060
        %v2063 = vunpack.c.l.s4 1983009808
        %v2064 = vunpack.c.0.s8 %v2063
        %v2065 = vperm.slane %v2057, %v2064
        %v2066 = vrot.slane %v2061, 4
        %v2067 = vsel %vm1734, %v2066, %v2051
        %v2068 = vrot.slane %v2051, 4
        %v2069 = vsel %vm1734, %v2061, %v2068
        %v2071 = vunpack.c.l.s4 1934713408
        %v2072 = vunpack.c.0.s8 %v2071
        %v2073 = vperm.slane %v2067, %v2072
        %v2075 = vunpack.c.l.s4 1934713408
        %v2076 = vunpack.c.0.s8 %v2075
        %v2077 = vperm.slane %v2069, %v2076
        %v2078 = vrot.slane %v2065, 4
        %v2079 = vsel %vm1734, %v2078, %v2055
        %v2080 = vrot.slane %v2055, 4
        %v2081 = vsel %vm1734, %v2065, %v2080
        %v2083 = vunpack.c.l.s4 1934713408
        %v2084 = vunpack.c.0.s8 %v2083
        %v2085 = vperm.slane %v2079, %v2084
        %v2087 = vunpack.c.l.s4 1934713408
        %v2088 = vunpack.c.0.s8 %v2087
        %v2089 = vperm.slane %v2081, %v2088
        %v2090 = vrot.slane %v2073, 4
        %v2091 = vsel %vm1734, 0.0, %v2090
        %v2092 = vrot.slane %v2077, 4
        %v2093 = vsel %vm1734, 0.0, %v2092
        %v2094 = vrot.slane %v2085, 4
        %v2095 = vsel %vm1734, 0.0, %v2094
        %v2096 = vrot.slane %v2089, 4
        %v2097 = vsel %vm1734, 0.0, %v2096
        %v2098 = vrot.slane %v1646, 4
        %v2099 = vsel %vm1734, 0.0, %v2098
        %v2101 = vunpack.c.l.s4 1983009808
        %v2102 = vunpack.c.0.s8 %v2101
        %v2103 = vperm.slane %v1646, %v2102
        %v2105 = vunpack.c.l.s4 1983009808
        %v2106 = vunpack.c.0.s8 %v2105
        %v2107 = vperm.slane %v2099, %v2106
        %v2108 = vrot.slane %v1731, 4
        %v2109 = vsel %vm1734, 0.0, %v2108
        %v2111 = vunpack.c.l.s4 1983009808
        %v2112 = vunpack.c.0.s8 %v2111
        %v2113 = vperm.slane %v1731, %v2112
        %v2115 = vunpack.c.l.s4 1983009808
        %v2116 = vunpack.c.0.s8 %v2115
        %v2117 = vperm.slane %v2109, %v2116
        %v2118 = vrot.slane %v2113, 4
        %v2119 = vsel %vm1734, %v2118, %v2103
        %v2120 = vrot.slane %v2103, 4
        %v2121 = vsel %vm1734, %v2113, %v2120
        %v2123 = vunpack.c.l.s4 1934713408
        %v2124 = vunpack.c.0.s8 %v2123
        %v2125 = vperm.slane %v2119, %v2124
        %v2127 = vunpack.c.l.s4 1934713408
        %v2128 = vunpack.c.0.s8 %v2127
        %v2129 = vperm.slane %v2121, %v2128
        %v2130 = vrot.slane %v2117, 4
        %v2131 = vsel %vm1734, %v2130, %v2107
        %v2132 = vrot.slane %v2107, 4
        %v2133 = vsel %vm1734, %v2117, %v2132
        %v2135 = vunpack.c.l.s4 1934713408
        %v2136 = vunpack.c.0.s8 %v2135
        %v2137 = vperm.slane %v2131, %v2136
        %v2139 = vunpack.c.l.s4 1934713408
        %v2140 = vunpack.c.0.s8 %v2139
        %v2141 = vperm.slane %v2133, %v2140
        %v2142 = vrot.slane %v2125, 4
        %v2143 = vsel %vm1734, 0.0, %v2142
        %v2144 = vrot.slane %v2129, 4
        %v2145 = vsel %vm1734, 0.0, %v2144
        %v2146 = vrot.slane %v2137, 4
        %v2147 = vsel %vm1734, 0.0, %v2146
        %v2148 = vrot.slane %v2141, 4
        %v2149 = vsel %vm1734, 0.0, %v2148
        %2151 = vrot.lane.b32.xlu0 %v1779, 64
        %v2152 = vpop.permute.xlu0 %2151
        %2155 = vrot.lane.b32.xlu0 %v1781, 64
        %v2156 = vpop.permute.xlu0 %2155
        %2159 = vrot.lane.b32.xlu0 %v1783, 64
        %v2160 = vpop.permute.xlu0 %2159
        %2163 = vrot.lane.b32.xlu0 %v1785, 64
        %v2164 = vpop.permute.xlu0 %2163
        %2167 = vrot.lane.b32.xlu0 %v1831, 64
        %v2168 = vpop.permute.xlu0 %2167
        %2171 = vrot.lane.b32.xlu0 %v1833, 64
        %v2172 = vpop.permute.xlu0 %2171
        %2175 = vrot.lane.b32.xlu0 %v1835, 64
        %v2176 = vpop.permute.xlu0 %2175
        %2179 = vrot.lane.b32.xlu0 %v1837, 64
        %v2180 = vpop.permute.xlu0 %2179
        %2183 = vrot.lane.b32.xlu0 %v1883, 64
        %v2184 = vpop.permute.xlu0 %2183
        %2187 = vrot.lane.b32.xlu0 %v1885, 64
        %v2188 = vpop.permute.xlu0 %2187
        %2191 = vrot.lane.b32.xlu0 %v1887, 64
        %v2192 = vpop.permute.xlu0 %2191
        %2195 = vrot.lane.b32.xlu0 %v1889, 64
        %v2196 = vpop.permute.xlu0 %2195
        %2199 = vrot.lane.b32.xlu0 %v1935, 64
        %v2200 = vpop.permute.xlu0 %2199
        %2203 = vrot.lane.b32.xlu0 %v1937, 64
        %v2204 = vpop.permute.xlu0 %2203
        %2207 = vrot.lane.b32.xlu0 %v1939, 64
        %v2208 = vpop.permute.xlu0 %2207
        %2211 = vrot.lane.b32.xlu0 %v1941, 64
        %v2212 = vpop.permute.xlu0 %2211
        %2215 = vrot.lane.b32.xlu0 %v1987, 64
        %v2216 = vpop.permute.xlu0 %2215
        %2219 = vrot.lane.b32.xlu0 %v1989, 64
        %v2220 = vpop.permute.xlu0 %2219
        %2223 = vrot.lane.b32.xlu0 %v1991, 64
        %v2224 = vpop.permute.xlu0 %2223
        %2227 = vrot.lane.b32.xlu0 %v1993, 64
        %v2228 = vpop.permute.xlu0 %2227
        %2231 = vrot.lane.b32.xlu0 %v2039, 64
        %v2232 = vpop.permute.xlu0 %2231
        %2235 = vrot.lane.b32.xlu0 %v2041, 64
        %v2236 = vpop.permute.xlu0 %2235
        %2239 = vrot.lane.b32.xlu0 %v2043, 64
        %v2240 = vpop.permute.xlu0 %2239
        %2243 = vrot.lane.b32.xlu0 %v2045, 64
        %v2244 = vpop.permute.xlu0 %2243
        %2247 = vrot.lane.b32.xlu0 %v2091, 64
        %v2248 = vpop.permute.xlu0 %2247
        %2251 = vrot.lane.b32.xlu0 %v2093, 64
        %v2252 = vpop.permute.xlu0 %2251
        %2255 = vrot.lane.b32.xlu0 %v2095, 64
        %v2256 = vpop.permute.xlu0 %2255
        %2259 = vrot.lane.b32.xlu0 %v2097, 64
        %v2260 = vpop.permute.xlu0 %2259
        %2263 = vrot.lane.b32.xlu0 %v2143, 64
        %v2264 = vpop.permute.xlu0 %2263
        %2267 = vrot.lane.b32.xlu0 %v2145, 64
        %v2268 = vpop.permute.xlu0 %2267
        %2271 = vrot.lane.b32.xlu0 %v2147, 64
        %v2272 = vpop.permute.xlu0 %2271
        %2275 = vrot.lane.b32.xlu0 %v2149, 64
        %v2276 = vpop.permute.xlu0 %2275
        %v2278 = vsel %vm1370, %v1761, %v2152
        %v2279 = vsel %vm1370, %v1765, %v2156
        %v2280 = vsel %vm1370, %v1773, %v2160
        %v2281 = vsel %vm1370, %v1777, %v2164
        %v2282 = vsel %vm1370, %v1813, %v2168
        %v2283 = vsel %vm1370, %v1817, %v2172
        %v2284 = vsel %vm1370, %v1825, %v2176
        %v2285 = vsel %vm1370, %v1829, %v2180
        %v2286 = vsel %vm1370, %v1865, %v2184
        %v2287 = vsel %vm1370, %v1869, %v2188
        %v2288 = vsel %vm1370, %v1877, %v2192
        %v2289 = vsel %vm1370, %v1881, %v2196
        %v2290 = vsel %vm1370, %v1917, %v2200
        %v2291 = vsel %vm1370, %v1921, %v2204
        %v2292 = vsel %vm1370, %v1929, %v2208
        %v2293 = vsel %vm1370, %v1933, %v2212
        %v2294 = vsel %vm1370, %v1969, %v2216
        %v2295 = vsel %vm1370, %v1973, %v2220
        %v2296 = vsel %vm1370, %v1981, %v2224
        %v2297 = vsel %vm1370, %v1985, %v2228
        %v2298 = vsel %vm1370, %v2021, %v2232
        %v2299 = vsel %vm1370, %v2025, %v2236
        %v2300 = vsel %vm1370, %v2033, %v2240
        %v2301 = vsel %vm1370, %v2037, %v2244
        %v2302 = vsel %vm1370, %v2073, %v2248
        %v2303 = vsel %vm1370, %v2077, %v2252
        %v2304 = vsel %vm1370, %v2085, %v2256
        %v2305 = vsel %vm1370, %v2089, %v2260
        %v2306 = vsel %vm1370, %v2125, %v2264
        %v2307 = vsel %vm1370, %v2129, %v2268
        %v2308 = vsel %vm1370, %v2137, %v2272
        %v2309 = vsel %vm1370, %v2141, %v2276
        %v2342 = vrot.slane %v2279, 6
        %v2343 = vrot.slane %v2280, 4
        %v2344 = vrot.slane %v2281, 2
        %v2345 = vrot.slane %v2283, 6
        %v2346 = vrot.slane %v2284, 4
        %v2347 = vrot.slane %v2285, 2
        %v2348 = vrot.slane %v2287, 6
        %v2349 = vrot.slane %v2288, 4
        %v2350 = vrot.slane %v2289, 2
        %v2351 = vrot.slane %v2291, 6
        %v2352 = vrot.slane %v2292, 4
        %v2353 = vrot.slane %v2293, 2
        %v2354 = vrot.slane %v2295, 6
        %v2355 = vrot.slane %v2296, 4
        %v2356 = vrot.slane %v2297, 2
        %v2357 = vrot.slane %v2299, 6
        %v2358 = vrot.slane %v2300, 4
        %v2359 = vrot.slane %v2301, 2
        %v2360 = vrot.slane %v2303, 6
        %v2361 = vrot.slane %v2304, 4
        %v2362 = vrot.slane %v2305, 2
        %v2363 = vrot.slane %v2307, 6
        %v2364 = vrot.slane %v2308, 4
        %v2365 = vrot.slane %v2309, 2
        %vm2366 = vcmask 1041408
        %v2367 = vsel %vm2366, %v2278, %v2342
        %vm2368 = vcmask 1045508
        %v2369 = vsel %vm2368, %v2343, %v2344
        %vm2370 = vcmask 1043456
        %v2371 = vsel %vm2370, %v2367, %v2369
        %v2372 = vsel %vm2366, %v2282, %v2345
        %v2373 = vsel %vm2368, %v2346, %v2347
        %v2374 = vsel %vm2370, %v2372, %v2373
        %v2375 = vsel %vm2366, %v2286, %v2348
        %v2376 = vsel %vm2368, %v2349, %v2350
        %v2377 = vsel %vm2370, %v2375, %v2376
        %v2378 = vsel %vm2366, %v2290, %v2351
        %v2379 = vsel %vm2368, %v2352, %v2353
        %v2380 = vsel %vm2370, %v2378, %v2379
        %v2381 = vsel %vm2366, %v2294, %v2354
        %v2382 = vsel %vm2368, %v2355, %v2356
        %v2383 = vsel %vm2370, %v2381, %v2382
        %v2384 = vsel %vm2366, %v2298, %v2357
        %v2385 = vsel %vm2368, %v2358, %v2359
        %v2386 = vsel %vm2370, %v2384, %v2385
        %v2387 = vsel %vm2366, %v2302, %v2360
        %v2388 = vsel %vm2368, %v2361, %v2362
        %v2389 = vsel %vm2370, %v2387, %v2388
        %v2390 = vsel %vm2366, %v2306, %v2363
        %v2391 = vsel %vm2368, %v2364, %v2365
        %v2392 = vsel %vm2370, %v2390, %v2391
        %2401 = vst [vmem:[%s139] sm:$0xff] %v2371
        %2402 = vst [vmem:[%s139 + $0x8] sm:$0xff] %v2374
        %2403 = vst [vmem:[%s139 + $0x10] sm:$0xff] %v2377
        %2404 = vst [vmem:[%s139 + $0x18] sm:$0xff] %v2380
        %2405 = vst [vmem:[%s139 + $0x20] sm:$0xff] %v2383
        %2406 = vst [vmem:[%s139 + $0x28] sm:$0xff] %v2386
        %2407 = vst [vmem:[%s139 + $0x30] sm:$0xff] %v2389
        %2408 = vst [vmem:[%s139 + $0x38] sm:$0xff] %v2392
        %s2409 = sand.u32 %s71, 1
        %s2410 = scalar_lea.sflag [#allocation3], %s2409
        %s2411 = sand.u32 %s71, 1
        %s2412 = smul.addr %s2411, 64
        %s2413 = scalar_lea.vmem [#allocation2], %s2412
        // Predicated region
        $region29: #{tpu_custom_call.1} parent=27 // pred_check
          %p2414 = pneg %p81
        $region30: #{tpu_custom_call.1} parent=27 // pred_check_branch
          %2416 = sbr.rel (%p2414) target = $region32
        $region31: #{tpu_custom_call.1} parent=27 // pred_region
          %2418 = vsyncadd %s2410, 0
          %s2419 = smul.addr %s16, 32
          %s2420 = smul.addr %s2419, 2
          %s2421 = scalar_lea.hbm %s2, %s2420
          %s2423 = sshll.u32 %s2413, 4
          %s2424 = int_to_ptr.vmem [resolvable:$true] %s2423
          %s2425 = sshll.u32 %s2421, 4
          %s2426 = int_to_ptr.hbm [resolvable:$true] %s2425
          %2428 = dma.vmem_to_hbm [thread:$0]  %s2424, 1024, %s2426, %s2410
        $region32: #{tpu_custom_call.1} parent=27 // pred_fallthru
          _
      $region28: #{tpu_custom_call.1} parent=5 // pred_fallthru
        _
      %p2429 = scmp.le.s32.totalorder 2, %s11
      // Predicated region
      $region33: #{tpu_custom_call.1} parent=5 // pred_check
        %p2430 = pneg %p2429
      $region34: #{tpu_custom_call.1} parent=5 // pred_check_branch
        %2432 = sbr.rel (%p2430) target = $region36
      $region35: #{tpu_custom_call.1} parent=5 // pred_region
        %s2433 = ssub.s32 %s11, 2
        // Predicated region
        $region37: #{tpu_custom_call.1} parent=35 // pred_check
          %p2434 = pneg %p87
        $region38: #{tpu_custom_call.1} parent=35 // pred_check_branch
          %2436 = sbr.rel (%p2434) target = $region40
        $region39: #{tpu_custom_call.1} parent=35 // pred_region
          %s2437 = sand.u32 %s72, 1
          %s2438 = scalar_lea.sflag [#allocation3], %s2437
          %s2439 = sand.u32 %s72, 1
          %s2440 = smul.addr %s2439, 64
          %s2441 = scalar_lea.vmem [#allocation2], %s2440
          %2443 = dma.done %s2438, 1024
        $region40: #{tpu_custom_call.1} parent=35 // pred_fallthru
          _
      $region36: #{tpu_custom_call.1} parent=5 // pred_fallthru
        _
    $region6: #{tpu_custom_call.1} parent=1 // loop_footer
      %s15 = sadd.s32 1, %s11
    $region7: #{tpu_custom_call.1} parent=1 // loop_footer_branch
      %10 = sbr.rel target = $region3
    $region8: #{tpu_custom_call.1} parent=1 // loop_exit
      _
    %2444 = vsyncpa [#allocation3], 1
    %s2445 = scalar_lea.sflag [#allocation3], 1
    %2446 = vsyncpa %s2445, 1

</llo_original>
